<compile_context>
chip_gen: v6e
topology: v6e:2x2x1
jax: 0.10.0
libtpu: 0.0.40
codegen_flags: <defaults>
</compile_context>

<pallas_src>
import math
import numpy as np
import jax
import jax.numpy as jnp
from jax import lax
from jax.experimental import pallas as pl
from jax.experimental.pallas import tpu as pltpu

# --- toy, lane-dense hyper-parameters (real model: H=768, 12 heads, 12 layers) ---
B, S = 2, 8
NUM_HEADS, HEAD_DIM = 2, 128
H = NUM_HEADS * HEAD_DIM          # 256 -> all last-dim slice offsets 128-aligned
INTER = 2 * H                     # 512 FFN intermediate
C = 5                             # class_num (labels with count >= 20, + background)
C_PAD = 128                       # lane-dense padded logits width (sliced to C outside)
VOCAB = 64
LN_EPS = 1e-12

# static column offsets inside the packed bf16 weight slab (all multiples of 128)
OFF_QKV = 0
OFF_WO = 3 * H                    # 768
OFF_W1 = 4 * H                    # 1024
OFF_WP = 4 * H + INTER            # 1536
OFF_WFC = 5 * H + INTER           # 1792
OFF_W2T = 5 * H + INTER + C_PAD   # 1920
WSLAB_COLS = OFF_W2T + INTER      # 2432

_NT = (((1,), (1,)), ((), ()))    # contract last dim of both operands (NT matmul)


def _layer_norm(h, g, b):
    mu = jnp.mean(h, axis=-1, keepdims=True)
    var = jnp.mean((h - mu) ** 2, axis=-1, keepdims=True)
    return (h - mu) * lax.rsqrt(var + LN_EPS) * g + b


def parabert_kernel(x_ref, mask_ref, wslab_ref, bln_ref, out_ref):
    """One sequence per grid step: emb-LN -> fused-QKV MHSA -> FFN -> pooler -> fc."""
    x = x_ref[0]                  # (S, H) f32 embeddings for this sequence
    mask = mask_ref[0]            # (1, S) f32, 1.0 = keep, 0.0 = pad
    bln = bln_ref[...]            # (8, 3H) f32 packed biases + LN params

    bqkv = bln[0:1, :]
    bo, b2, bp = bln[1:2, 0:H], bln[1:2, H:2 * H], bln[1:2, 2 * H:3 * H]
    b1, bfc = bln[2:3, 0:INTER], bln[2:3, INTER:INTER + C_PAD]
    lne_g, lne_b, ln1_g = bln[3:4, 0:H], bln[3:4, H:2 * H], bln[3:4, 2 * H:3 * H]
    ln1_b, ln2_g, ln2_b = bln[4:5, 0:H], bln[4:5, H:2 * H], bln[4:5, 2 * H:3 * H]

    # embedding LayerNorm (f32 VPU math)
    x = _layer_norm(x, lne_g, lne_b)

    # fused QKV projection: one bf16 MXU matmul, f32 accumulate
    qkv = jnp.dot(x.astype(jnp.bfloat16), wslab_ref[:, OFF_QKV:OFF_QKV + 3 * H],
                  preferred_element_type=jnp.float32) + bqkv            # (S, 3H)

    neg_bias = (mask - 1.0) * 1e9                                       # (1, S) additive key mask
    scale = 1.0 / math.sqrt(HEAD_DIM)

    # multi-head self-attention: 128-aligned lane slices, NT score matmul
    ctx_heads = []
    for hd in range(NUM_HEADS):
        lo = hd * HEAD_DIM
        qh = qkv[:, lo:lo + HEAD_DIM].astype(jnp.bfloat16)
        kh = qkv[:, H + lo:H + lo + HEAD_DIM].astype(jnp.bfloat16)
        vh = qkv[:, 2 * H + lo:2 * H + lo + HEAD_DIM].astype(jnp.bfloat16)
        sc = lax.dot_general(qh, kh, _NT, preferred_element_type=jnp.float32)
        sc = sc * scale + neg_bias
        sc = sc - jnp.max(sc, axis=-1, keepdims=True)
        p = jnp.exp(sc)
        p = p / jnp.sum(p, axis=-1, keepdims=True)                      # exact softmax division
        ctx_heads.append(jnp.dot(p.astype(jnp.bfloat16), vh,
                                 preferred_element_type=jnp.float32))
    ctx = jnp.concatenate(ctx_heads, axis=-1)                           # (S, H), 128-aligned

    attn = jnp.dot(ctx.astype(jnp.bfloat16), wslab_ref[:, OFF_WO:OFF_WO + H],
                   preferred_element_type=jnp.float32) + bo
    x = _layer_norm(x + attn, ln1_g, ln1_b)

    # feed-forward (W2 stored transposed in the slab -> NT matmul, no relayout)
    h1 = jax.nn.gelu(jnp.dot(x.astype(jnp.bfloat16), wslab_ref[:, OFF_W1:OFF_W1 + INTER],
                             preferred_element_type=jnp.float32) + b1)
    ffn = lax.dot_general(h1.astype(jnp.bfloat16), wslab_ref[:, OFF_W2T:OFF_W2T + INTER],
                          _NT, preferred_element_type=jnp.float32) + b2
    x = _layer_norm(x + ffn, ln2_g, ln2_b)

    # pooler + classifier (self.fc) on all S rows so the final store is a full,
    # unmasked (8, 128) tile; only row 0 ([CLS]) is consumed by the wrapper.
    pooled = jnp.tanh(jnp.dot(x.astype(jnp.bfloat16), wslab_ref[:, OFF_WP:OFF_WP + H],
                              preferred_element_type=jnp.float32) + bp)
    logits = jnp.dot(pooled.astype(jnp.bfloat16), wslab_ref[:, OFF_WFC:OFF_WFC + C_PAD],
                     preferred_element_type=jnp.float32) + bfc
    out_ref[0] = logits


def init_params(key):
    ks = jax.random.split(key, 9)

    def dense(k, shape):
        return jax.random.normal(k, shape, jnp.float32) * 0.02

    zeros = lambda s: jnp.zeros(s, jnp.float32)
    ones = lambda s: jnp.ones(s, jnp.float32)

    wqkv = dense(ks[0], (H, 3 * H))
    wo = dense(ks[1], (H, H))
    w1 = dense(ks[2], (H, INTER))
    w2 = dense(ks[3], (INTER, H))
    wp = dense(ks[4], (H, H))
    wfc = dense(ks[5], (H, C))
    wfc_pad = zeros((H, C_PAD)).at[:, :C].set(wfc)

    # packed bf16 weight slab: [Wqkv | Wo | W1 | Wp | Wfc_pad | W2^T]  -> (H, 2432)
    wslab = jnp.concatenate([wqkv, wo, w1, wp, wfc_pad, w2.T], axis=1).astype(jnp.bfloat16)

    # packed f32 bias / LayerNorm slab (8, 3H); all biases start at zero
    row0 = zeros((3 * H,))                                                  # bqkv
    row1 = zeros((3 * H,))                                                  # [bo | b2 | bp]
    row2 = zeros((3 * H,))                                                  # [b1 | bfc | pad]
    row3 = jnp.concatenate([ones((H,)), zeros((H,)), ones((H,))])           # lne_g, lne_b, ln1_g
    row4 = jnp.concatenate([zeros((H,)), ones((H,)), zeros((H,))])          # ln1_b, ln2_g, ln2_b
    bln = jnp.stack([row0, row1, row2, row3, row4,
                     zeros((3 * H,)), zeros((3 * H,)), zeros((3 * H,))], axis=0)

    return {
        'word_emb': dense(ks[6], (VOCAB, H)),
        'pos_emb': dense(ks[7], (S, H)),
        'type_emb': dense(ks[8], (H,)),
        'wslab': wslab,
        'bln': bln,
    }


def parabert_logits(input_ids, attention_mask, params):
    # embedding gather + position + type embeddings (glue, stays in plain JAX)
    x = (params['word_emb'][input_ids]
         + params['pos_emb'][None, :, :]
         + params['type_emb'][None, None, :]).astype(jnp.float32)      # (B, S, H)
    mask3 = attention_mask.astype(jnp.float32).reshape(B, 1, S)        # (B, 1, S)

    out = pl.pallas_call(
        parabert_kernel,
        out_shape=jax.ShapeDtypeStruct((B, S, C_PAD), jnp.float32),
        grid_spec=pltpu.PrefetchScalarGridSpec(
            num_scalar_prefetch=0,
            grid=(B,),
            in_specs=[
                pl.BlockSpec((1, S, H), lambda b: (b, 0, 0)),          # per-sequence tokens
                pl.BlockSpec((1, 1, S), lambda b: (b, 0, 0)),          # per-sequence mask
                pl.BlockSpec((H, WSLAB_COLS), lambda b: (0, 0)),       # resident weight slab
                pl.BlockSpec((8, 3 * H), lambda b: (0, 0)),            # resident bias/LN slab
            ],
            out_specs=pl.BlockSpec((1, S, C_PAD), lambda b: (b, 0, 0)),
        ),
        compiler_params=pltpu.CompilerParams(
            dimension_semantics=("parallel",)),                        # 2 TCs on v7x
    )(x, mask3, params['wslab'], params['bln'])
    # matches: result = self.fc(bcls).view(-1, self.class_num)
    return out[:, 0, :C]


def weighted_cross_entropy(logits, labels, class_weight):
    """nn.CrossEntropyLoss(weight=w): sum_i w[y_i]*(-log_softmax(x_i)[y_i]) / sum_i w[y_i]."""
    logp = jax.nn.log_softmax(logits, axis=-1)
    nll = -jnp.take_along_axis(logp, labels[:, None], axis=1)[:, 0]
    w = class_weight[labels]
    return jnp.sum(w * nll) / jnp.sum(w)


def accuracy(score, label, acc_result):
    """Host-side replica of the module's `accuracy` (train mode)."""
    if acc_result is None:
        acc_result = {'right': 0, 'pre_num': 0, 'actual_num': 0}
    score = np.asarray(score)
    label = np.asarray(label)
    predict = score.argmax(axis=1)
    acc_result['pre_num'] += int((predict != 0).sum())
    sel = label != 0
    acc_result['right'] += int((predict[sel] == label[sel]).sum())
    acc_result['actual_num'] += int(sel.sum())
    return acc_result


if __name__ == "__main__":
    key = jax.random.PRNGKey(0)
    k_param, k_ids = jax.random.split(key)

    params = init_params(k_param)
    input_ids = jax.random.randint(k_ids, (B, S), 0, VOCAB)
    # second sequence has 2 padded positions
    attention_mask = (jnp.arange(S)[None, :] < jnp.array([S, S - 2])[:, None]).astype(jnp.int32)
    labels = jnp.array([1, 3], dtype=jnp.int32)

    logits = jax.block_until_ready(parabert_logits(input_ids, attention_mask, params))
    assert logits.shape == (B, C)

    # train-mode head: weighted CE loss (weight[0] = 0.3) + accuracy dict
    class_weight = jnp.ones((C,), jnp.float32).at[0].set(0.3)
    loss = jax.block_until_ready(weighted_cross_entropy(logits, labels, class_weight))
    acc_result = accuracy(logits, labels, None)
    _ = {'loss': float(loss), 'acc_result': acc_result}

    print("KERNEL_OK")
</pallas_src>

<mosaic_0001>
module attributes {stable_mosaic.version = 11 : i64} {
  func.func @parabert_kernel(%arg0: i32, %arg1: memref<1x8x256xf32, #tpu.memory_space<vmem>>, %arg2: memref<1x1x8xf32, #tpu.memory_space<vmem>>, %arg3: memref<256x2432xbf16, #tpu.memory_space<vmem>>, %arg4: memref<8x768xf32, #tpu.memory_space<vmem>>, %arg5: memref<1x8x128xf32, #tpu.memory_space<vmem>>) attributes {dimension_semantics = [#tpu.dimension_semantics<parallel>], iteration_bounds = array<i64: 2>, scalar_prefetch = 0 : i64, scratch_operands = 0 : i64, tpu.core_type = #tpu.core_type<tc>, window_params = [{transform_indices = @transform_0, window_bounds = array<i64: 1, 8, 256>}, {transform_indices = @transform_1, window_bounds = array<i64: 1, 1, 8>}, {pipeline_mode = #tpu.pipeline_mode<synchronous>, transform_indices = @transform_2, window_bounds = array<i64: 256, 2432>}, {pipeline_mode = #tpu.pipeline_mode<synchronous>, transform_indices = @transform_3, window_bounds = array<i64: 8, 768>}, {transform_indices = @transform_4, window_bounds = array<i64: 1, 8, 128>}]} {
    %c0 = arith.constant 0 : index
    %c0_0 = arith.constant 0 : index
    %c0_1 = arith.constant 0 : index
    %0 = vector.load %arg1[%c0, %c0_0, %c0_1] : memref<1x8x256xf32, #tpu.memory_space<vmem>>, vector<1x8x256xf32>
    %1 = vector.shape_cast %0 : vector<1x8x256xf32> to vector<8x256xf32>
    %c0_2 = arith.constant 0 : index
    %c0_3 = arith.constant 0 : index
    %c0_4 = arith.constant 0 : index
    %2 = vector.load %arg2[%c0_2, %c0_3, %c0_4] : memref<1x1x8xf32, #tpu.memory_space<vmem>>, vector<1x1x8xf32>
    %3 = vector.shape_cast %2 : vector<1x1x8xf32> to vector<1x8xf32>
    %c0_5 = arith.constant 0 : index
    %c0_6 = arith.constant 0 : index
    %4 = vector.load %arg4[%c0_5, %c0_6] : memref<8x768xf32, #tpu.memory_space<vmem>>, vector<8x768xf32>
    %5 = vector.extract_strided_slice %4 {offsets = [0, 0], sizes = [1, 768], strides = [1, 1]} : vector<8x768xf32> to vector<1x768xf32>
    %6 = vector.extract_strided_slice %4 {offsets = [1, 0], sizes = [1, 256], strides = [1, 1]} : vector<8x768xf32> to vector<1x256xf32>
    %7 = vector.extract_strided_slice %4 {offsets = [1, 256], sizes = [1, 256], strides = [1, 1]} : vector<8x768xf32> to vector<1x256xf32>
    %8 = vector.extract_strided_slice %4 {offsets = [1, 512], sizes = [1, 256], strides = [1, 1]} : vector<8x768xf32> to vector<1x256xf32>
    %9 = vector.extract_strided_slice %4 {offsets = [2, 0], sizes = [1, 512], strides = [1, 1]} : vector<8x768xf32> to vector<1x512xf32>
    %10 = vector.extract_strided_slice %4 {offsets = [2, 512], sizes = [1, 128], strides = [1, 1]} : vector<8x768xf32> to vector<1x128xf32>
    %11 = vector.extract_strided_slice %4 {offsets = [3, 0], sizes = [1, 256], strides = [1, 1]} : vector<8x768xf32> to vector<1x256xf32>
    %12 = vector.extract_strided_slice %4 {offsets = [3, 256], sizes = [1, 256], strides = [1, 1]} : vector<8x768xf32> to vector<1x256xf32>
    %13 = vector.extract_strided_slice %4 {offsets = [3, 512], sizes = [1, 256], strides = [1, 1]} : vector<8x768xf32> to vector<1x256xf32>
    %14 = vector.extract_strided_slice %4 {offsets = [4, 0], sizes = [1, 256], strides = [1, 1]} : vector<8x768xf32> to vector<1x256xf32>
    %15 = vector.extract_strided_slice %4 {offsets = [4, 256], sizes = [1, 256], strides = [1, 1]} : vector<8x768xf32> to vector<1x256xf32>
    %16 = vector.extract_strided_slice %4 {offsets = [4, 512], sizes = [1, 256], strides = [1, 1]} : vector<8x768xf32> to vector<1x256xf32>
    %cst = arith.constant dense<0.000000e+00> : vector<8xf32>
    %17 = vector.multi_reduction <add>, %1, %cst [1] : vector<8x256xf32> to vector<8xf32>
    %18 = vector.shape_cast %17 : vector<8xf32> to vector<8x1xf32>
    %cst_7 = arith.constant 2.560000e+02 : f32
    %19 = vector.broadcast %cst_7 : f32 to vector<8x1xf32>
    %20 = arith.divf %18, %19 : vector<8x1xf32>
    %21 = vector.broadcast %20 : vector<8x1xf32> to vector<8x256xf32>
    %22 = arith.subf %1, %21 : vector<8x256xf32>
    %23 = arith.mulf %22, %22 : vector<8x256xf32>
    %cst_8 = arith.constant dense<0.000000e+00> : vector<8xf32>
    %24 = vector.multi_reduction <add>, %23, %cst_8 [1] : vector<8x256xf32> to vector<8xf32>
    %25 = vector.shape_cast %24 : vector<8xf32> to vector<8x1xf32>
    %cst_9 = arith.constant 2.560000e+02 : f32
    %26 = vector.broadcast %cst_9 : f32 to vector<8x1xf32>
    %27 = arith.divf %25, %26 : vector<8x1xf32>
    %28 = vector.broadcast %20 : vector<8x1xf32> to vector<8x256xf32>
    %29 = arith.subf %1, %28 : vector<8x256xf32>
    %cst_10 = arith.constant 9.99999996E-13 : f32
    %30 = vector.broadcast %cst_10 : f32 to vector<8x1xf32>
    %31 = arith.addf %27, %30 : vector<8x1xf32>
    %32 = math.rsqrt %31 : vector<8x1xf32>
    %33 = vector.broadcast %32 : vector<8x1xf32> to vector<8x256xf32>
    %34 = arith.mulf %29, %33 : vector<8x256xf32>
    %35 = vector.broadcast %11 : vector<1x256xf32> to vector<8x256xf32>
    %36 = arith.mulf %34, %35 : vector<8x256xf32>
    %37 = vector.broadcast %12 : vector<1x256xf32> to vector<8x256xf32>
    %38 = arith.addf %36, %37 : vector<8x256xf32>
    %39 = arith.truncf %38 : vector<8x256xf32> to vector<8x256xbf16>
    %c0_11 = arith.constant 0 : index
    %c0_12 = arith.constant 0 : index
    %40 = vector.load %arg3[%c0_11, %c0_12] : memref<256x2432xbf16, #tpu.memory_space<vmem>>, vector<256x768xbf16>
    %cst_13 = arith.constant dense<0.000000e+00> : vector<8x768xf32>
    %41 = tpu.matmul %39, %40, %cst_13 {dimension_numbers = #tpu.dot_dimension_numbers<[1], [0], [0], [1], [0, 0, 1, 1], [], []>} : vector<8x256xbf16>, vector<256x768xbf16>, vector<8x768xf32> -> vector<8x768xf32>
    %42 = vector.broadcast %5 : vector<1x768xf32> to vector<8x768xf32>
    %43 = arith.addf %41, %42 : vector<8x768xf32>
    %cst_14 = arith.constant 1.000000e+00 : f32
    %44 = vector.broadcast %cst_14 : f32 to vector<1x8xf32>
    %45 = arith.subf %3, %44 : vector<1x8xf32>
    %cst_15 = arith.constant 1.000000e+09 : f32
    %46 = vector.broadcast %cst_15 : f32 to vector<1x8xf32>
    %47 = arith.mulf %45, %46 : vector<1x8xf32>
    %48 = vector.extract_strided_slice %43 {offsets = [0, 0], sizes = [8, 128], strides = [1, 1]} : vector<8x768xf32> to vector<8x128xf32>
    %49 = arith.truncf %48 : vector<8x128xf32> to vector<8x128xbf16>
    %50 = vector.extract_strided_slice %43 {offsets = [0, 256], sizes = [8, 128], strides = [1, 1]} : vector<8x768xf32> to vector<8x128xf32>
    %51 = arith.truncf %50 : vector<8x128xf32> to vector<8x128xbf16>
    %52 = vector.extract_strided_slice %43 {offsets = [0, 512], sizes = [8, 128], strides = [1, 1]} : vector<8x768xf32> to vector<8x128xf32>
    %53 = arith.truncf %52 : vector<8x128xf32> to vector<8x128xbf16>
    %cst_16 = arith.constant dense<0.000000e+00> : vector<8x8xf32>
    %54 = tpu.matmul %49, %51, %cst_16 {dimension_numbers = #tpu.dot_dimension_numbers<[1], [1], [0], [0], [0, 0, 1, 0], [], []>} : vector<8x128xbf16>, vector<8x128xbf16>, vector<8x8xf32> -> vector<8x8xf32>
    %cst_17 = arith.constant 0.0883883461 : f32
    %55 = vector.broadcast %cst_17 : f32 to vector<8x8xf32>
    %56 = arith.mulf %54, %55 : vector<8x8xf32>
    %57 = vector.broadcast %47 : vector<1x8xf32> to vector<8x8xf32>
    %58 = arith.addf %56, %57 : vector<8x8xf32>
    %cst_18 = arith.constant dense<0xFF800000> : vector<8xf32>
    %59 = vector.multi_reduction <maximumf>, %58, %cst_18 [1] : vector<8x8xf32> to vector<8xf32>
    %60 = vector.shape_cast %59 : vector<8xf32> to vector<8x1xf32>
    %61 = vector.broadcast %60 : vector<8x1xf32> to vector<8x8xf32>
    %62 = arith.subf %58, %61 : vector<8x8xf32>
    %63 = math.exp %62 : vector<8x8xf32>
    %cst_19 = arith.constant dense<0.000000e+00> : vector<8xf32>
    %64 = vector.multi_reduction <add>, %63, %cst_19 [1] : vector<8x8xf32> to vector<8xf32>
    %65 = vector.shape_cast %64 : vector<8xf32> to vector<8x1xf32>
    %66 = vector.broadcast %65 : vector<8x1xf32> to vector<8x8xf32>
    %67 = arith.divf %63, %66 : vector<8x8xf32>
    %68 = arith.truncf %67 : vector<8x8xf32> to vector<8x8xbf16>
    %cst_20 = arith.constant dense<0.000000e+00> : vector<8x128xf32>
    %69 = tpu.matmul %68, %53, %cst_20 {dimension_numbers = #tpu.dot_dimension_numbers<[1], [0], [0], [1], [0, 0, 1, 1], [], []>} : vector<8x8xbf16>, vector<8x128xbf16>, vector<8x128xf32> -> vector<8x128xf32>
    %70 = vector.extract_strided_slice %43 {offsets = [0, 128], sizes = [8, 128], strides = [1, 1]} : vector<8x768xf32> to vector<8x128xf32>
    %71 = arith.truncf %70 : vector<8x128xf32> to vector<8x128xbf16>
    %72 = vector.extract_strided_slice %43 {offsets = [0, 384], sizes = [8, 128], strides = [1, 1]} : vector<8x768xf32> to vector<8x128xf32>
    %73 = arith.truncf %72 : vector<8x128xf32> to vector<8x128xbf16>
    %74 = vector.extract_strided_slice %43 {offsets = [0, 640], sizes = [8, 128], strides = [1, 1]} : vector<8x768xf32> to vector<8x128xf32>
    %75 = arith.truncf %74 : vector<8x128xf32> to vector<8x128xbf16>
    %cst_21 = arith.constant dense<0.000000e+00> : vector<8x8xf32>
    %76 = tpu.matmul %71, %73, %cst_21 {dimension_numbers = #tpu.dot_dimension_numbers<[1], [1], [0], [0], [0, 0, 1, 0], [], []>} : vector<8x128xbf16>, vector<8x128xbf16>, vector<8x8xf32> -> vector<8x8xf32>
    %cst_22 = arith.constant 0.0883883461 : f32
    %77 = vector.broadcast %cst_22 : f32 to vector<8x8xf32>
    %78 = arith.mulf %76, %77 : vector<8x8xf32>
    %79 = vector.broadcast %47 : vector<1x8xf32> to vector<8x8xf32>
    %80 = arith.addf %78, %79 : vector<8x8xf32>
    %cst_23 = arith.constant dense<0xFF800000> : vector<8xf32>
    %81 = vector.multi_reduction <maximumf>, %80, %cst_23 [1] : vector<8x8xf32> to vector<8xf32>
    %82 = vector.shape_cast %81 : vector<8xf32> to vector<8x1xf32>
    %83 = vector.broadcast %82 : vector<8x1xf32> to vector<8x8xf32>
    %84 = arith.subf %80, %83 : vector<8x8xf32>
    %85 = math.exp %84 : vector<8x8xf32>
    %cst_24 = arith.constant dense<0.000000e+00> : vector<8xf32>
    %86 = vector.multi_reduction <add>, %85, %cst_24 [1] : vector<8x8xf32> to vector<8xf32>
    %87 = vector.shape_cast %86 : vector<8xf32> to vector<8x1xf32>
    %88 = vector.broadcast %87 : vector<8x1xf32> to vector<8x8xf32>
    %89 = arith.divf %85, %88 : vector<8x8xf32>
    %90 = arith.truncf %89 : vector<8x8xf32> to vector<8x8xbf16>
    %cst_25 = arith.constant dense<0.000000e+00> : vector<8x128xf32>
    %91 = tpu.matmul %90, %75, %cst_25 {dimension_numbers = #tpu.dot_dimension_numbers<[1], [0], [0], [1], [0, 0, 1, 1], [], []>} : vector<8x8xbf16>, vector<8x128xbf16>, vector<8x128xf32> -> vector<8x128xf32>
    %92 = tpu.concatenate %69, %91 in 1 : vector<8x128xf32>, vector<8x128xf32> -> vector<8x256xf32>
    %93 = arith.truncf %92 : vector<8x256xf32> to vector<8x256xbf16>
    %c0_26 = arith.constant 0 : index
    %c768 = arith.constant 768 : index
    %94 = vector.load %arg3[%c0_26, %c768] : memref<256x2432xbf16, #tpu.memory_space<vmem>>, vector<256x256xbf16>
    %cst_27 = arith.constant dense<0.000000e+00> : vector<8x256xf32>
    %95 = tpu.matmul %93, %94, %cst_27 {dimension_numbers = #tpu.dot_dimension_numbers<[1], [0], [0], [1], [0, 0, 1, 1], [], []>} : vector<8x256xbf16>, vector<256x256xbf16>, vector<8x256xf32> -> vector<8x256xf32>
    %96 = vector.broadcast %6 : vector<1x256xf32> to vector<8x256xf32>
    %97 = arith.addf %95, %96 : vector<8x256xf32>
    %98 = arith.addf %38, %97 : vector<8x256xf32>
    %cst_28 = arith.constant dense<0.000000e+00> : vector<8xf32>
    %99 = vector.multi_reduction <add>, %98, %cst_28 [1] : vector<8x256xf32> to vector<8xf32>
    %100 = vector.shape_cast %99 : vector<8xf32> to vector<8x1xf32>
    %cst_29 = arith.constant 2.560000e+02 : f32
    %101 = vector.broadcast %cst_29 : f32 to vector<8x1xf32>
    %102 = arith.divf %100, %101 : vector<8x1xf32>
    %103 = vector.broadcast %102 : vector<8x1xf32> to vector<8x256xf32>
    %104 = arith.subf %98, %103 : vector<8x256xf32>
    %105 = arith.mulf %104, %104 : vector<8x256xf32>
    %cst_30 = arith.constant dense<0.000000e+00> : vector<8xf32>
    %106 = vector.multi_reduction <add>, %105, %cst_30 [1] : vector<8x256xf32> to vector<8xf32>
    %107 = vector.shape_cast %106 : vector<8xf32> to vector<8x1xf32>
    %cst_31 = arith.constant 2.560000e+02 : f32
    %108 = vector.broadcast %cst_31 : f32 to vector<8x1xf32>
    %109 = arith.divf %107, %108 : vector<8x1xf32>
    %110 = vector.broadcast %102 : vector<8x1xf32> to vector<8x256xf32>
    %111 = arith.subf %98, %110 : vector<8x256xf32>
    %cst_32 = arith.constant 9.99999996E-13 : f32
    %112 = vector.broadcast %cst_32 : f32 to vector<8x1xf32>
    %113 = arith.addf %109, %112 : vector<8x1xf32>
    %114 = math.rsqrt %113 : vector<8x1xf32>
    %115 = vector.broadcast %114 : vector<8x1xf32> to vector<8x256xf32>
    %116 = arith.mulf %111, %115 : vector<8x256xf32>
    %117 = vector.broadcast %13 : vector<1x256xf32> to vector<8x256xf32>
    %118 = arith.mulf %116, %117 : vector<8x256xf32>
    %119 = vector.broadcast %14 : vector<1x256xf32> to vector<8x256xf32>
    %120 = arith.addf %118, %119 : vector<8x256xf32>
    %121 = arith.truncf %120 : vector<8x256xf32> to vector<8x256xbf16>
    %c0_33 = arith.constant 0 : index
    %c1024 = arith.constant 1024 : index
    %122 = vector.load %arg3[%c0_33, %c1024] : memref<256x2432xbf16, #tpu.memory_space<vmem>>, vector<256x512xbf16>
    %cst_34 = arith.constant dense<0.000000e+00> : vector<8x512xf32>
    %123 = tpu.matmul %121, %122, %cst_34 {dimension_numbers = #tpu.dot_dimension_numbers<[1], [0], [0], [1], [0, 0, 1, 1], [], []>} : vector<8x256xbf16>, vector<256x512xbf16>, vector<8x512xf32> -> vector<8x512xf32>
    %124 = vector.broadcast %9 : vector<1x512xf32> to vector<8x512xf32>
    %125 = arith.addf %123, %124 : vector<8x512xf32>
    %126 = arith.mulf %125, %125 : vector<8x512xf32>
    %127 = arith.mulf %125, %126 : vector<8x512xf32>
    %cst_35 = arith.constant 4.471500e-02 : f32
    %128 = vector.broadcast %cst_35 : f32 to vector<8x512xf32>
    %129 = arith.mulf %128, %127 : vector<8x512xf32>
    %130 = arith.addf %125, %129 : vector<8x512xf32>
    %cst_36 = arith.constant 0.797884583 : f32
    %131 = vector.broadcast %cst_36 : f32 to vector<8x512xf32>
    %132 = arith.mulf %131, %130 : vector<8x512xf32>
    %133 = math.tanh %132 : vector<8x512xf32>
    %cst_37 = arith.constant 1.000000e+00 : f32
    %134 = vector.broadcast %cst_37 : f32 to vector<8x512xf32>
    %135 = arith.addf %134, %133 : vector<8x512xf32>
    %cst_38 = arith.constant 5.000000e-01 : f32
    %136 = vector.broadcast %cst_38 : f32 to vector<8x512xf32>
    %137 = arith.mulf %136, %135 : vector<8x512xf32>
    %138 = arith.mulf %125, %137 : vector<8x512xf32>
    %139 = arith.truncf %138 : vector<8x512xf32> to vector<8x512xbf16>
    %c0_39 = arith.constant 0 : index
    %c1920 = arith.constant 1920 : index
    %140 = vector.load %arg3[%c0_39, %c1920] : memref<256x2432xbf16, #tpu.memory_space<vmem>>, vector<256x512xbf16>
    %cst_40 = arith.constant dense<0.000000e+00> : vector<8x256xf32>
    %141 = tpu.matmul %139, %140, %cst_40 {dimension_numbers = #tpu.dot_dimension_numbers<[1], [1], [0], [0], [0, 0, 1, 0], [], []>} : vector<8x512xbf16>, vector<256x512xbf16>, vector<8x256xf32> -> vector<8x256xf32>
    %142 = vector.broadcast %7 : vector<1x256xf32> to vector<8x256xf32>
    %143 = arith.addf %141, %142 : vector<8x256xf32>
    %144 = arith.addf %120, %143 : vector<8x256xf32>
    %cst_41 = arith.constant dense<0.000000e+00> : vector<8xf32>
    %145 = vector.multi_reduction <add>, %144, %cst_41 [1] : vector<8x256xf32> to vector<8xf32>
    %146 = vector.shape_cast %145 : vector<8xf32> to vector<8x1xf32>
    %cst_42 = arith.constant 2.560000e+02 : f32
    %147 = vector.broadcast %cst_42 : f32 to vector<8x1xf32>
    %148 = arith.divf %146, %147 : vector<8x1xf32>
    %149 = vector.broadcast %148 : vector<8x1xf32> to vector<8x256xf32>
    %150 = arith.subf %144, %149 : vector<8x256xf32>
    %151 = arith.mulf %150, %150 : vector<8x256xf32>
    %cst_43 = arith.constant dense<0.000000e+00> : vector<8xf32>
    %152 = vector.multi_reduction <add>, %151, %cst_43 [1] : vector<8x256xf32> to vector<8xf32>
    %153 = vector.shape_cast %152 : vector<8xf32> to vector<8x1xf32>
    %cst_44 = arith.constant 2.560000e+02 : f32
    %154 = vector.broadcast %cst_44 : f32 to vector<8x1xf32>
    %155 = arith.divf %153, %154 : vector<8x1xf32>
    %156 = vector.broadcast %148 : vector<8x1xf32> to vector<8x256xf32>
    %157 = arith.subf %144, %156 : vector<8x256xf32>
    %cst_45 = arith.constant 9.99999996E-13 : f32
    %158 = vector.broadcast %cst_45 : f32 to vector<8x1xf32>
    %159 = arith.addf %155, %158 : vector<8x1xf32>
    %160 = math.rsqrt %159 : vector<8x1xf32>
    %161 = vector.broadcast %160 : vector<8x1xf32> to vector<8x256xf32>
    %162 = arith.mulf %157, %161 : vector<8x256xf32>
    %163 = vector.broadcast %15 : vector<1x256xf32> to vector<8x256xf32>
    %164 = arith.mulf %162, %163 : vector<8x256xf32>
    %165 = vector.broadcast %16 : vector<1x256xf32> to vector<8x256xf32>
    %166 = arith.addf %164, %165 : vector<8x256xf32>
    %167 = arith.truncf %166 : vector<8x256xf32> to vector<8x256xbf16>
    %c0_46 = arith.constant 0 : index
    %c1536 = arith.constant 1536 : index
    %168 = vector.load %arg3[%c0_46, %c1536] : memref<256x2432xbf16, #tpu.memory_space<vmem>>, vector<256x256xbf16>
    %cst_47 = arith.constant dense<0.000000e+00> : vector<8x256xf32>
    %169 = tpu.matmul %167, %168, %cst_47 {dimension_numbers = #tpu.dot_dimension_numbers<[1], [0], [0], [1], [0, 0, 1, 1], [], []>} : vector<8x256xbf16>, vector<256x256xbf16>, vector<8x256xf32> -> vector<8x256xf32>
    %170 = vector.broadcast %8 : vector<1x256xf32> to vector<8x256xf32>
    %171 = arith.addf %169, %170 : vector<8x256xf32>
    %172 = math.tanh %171 : vector<8x256xf32>
    %173 = arith.truncf %172 : vector<8x256xf32> to vector<8x256xbf16>
    %c0_48 = arith.constant 0 : index
    %c1792 = arith.constant 1792 : index
    %174 = vector.load %arg3[%c0_48, %c1792] : memref<256x2432xbf16, #tpu.memory_space<vmem>>, vector<256x128xbf16>
    %cst_49 = arith.constant dense<0.000000e+00> : vector<8x128xf32>
    %175 = tpu.matmul %173, %174, %cst_49 {dimension_numbers = #tpu.dot_dimension_numbers<[1], [0], [0], [1], [0, 0, 1, 1], [], []>} : vector<8x256xbf16>, vector<256x128xbf16>, vector<8x128xf32> -> vector<8x128xf32>
    %176 = vector.broadcast %10 : vector<1x128xf32> to vector<8x128xf32>
    %177 = arith.addf %175, %176 : vector<8x128xf32>
    %c0_50 = arith.constant 0 : index
    %c0_51 = arith.constant 0 : index
    %c0_52 = arith.constant 0 : index
    %178 = vector.load %arg5[%c0_50, %c0_51, %c0_52] : memref<1x8x128xf32, #tpu.memory_space<vmem>>, vector<1x8x128xf32>
    %179 = vector.shape_cast %178 : vector<1x8x128xf32> to vector<8x128xf32>
    %180 = vector.shape_cast %177 : vector<8x128xf32> to vector<1x8x128xf32>
    tpu.vector_store %arg5[%c0_50, %c0_51, %c0_52], %180 {strides = array<i32>} : memref<1x8x128xf32, #tpu.memory_space<vmem>>, vector<1x8x128xf32>,
    return
  }
  func.func @transform_0(%arg0: i32) -> (i32, i32, i32) {
    %c0_i32 = arith.constant 0 : i32
    %c0_i32_0 = arith.constant 0 : i32
    %c0_i32_1 = arith.constant 0 : i32
    return %arg0, %c0_i32, %c0_i32_0 : i32, i32, i32
  }
  func.func @transform_1(%arg0: i32) -> (i32, i32, i32) {
    %c0_i32 = arith.constant 0 : i32
    %c0_i32_0 = arith.constant 0 : i32
    %c0_i32_1 = arith.constant 0 : i32
    return %arg0, %c0_i32, %c0_i32_0 : i32, i32, i32
  }
  func.func @transform_2(%arg0: i32) -> (i32, i32) {
    %c0_i32 = arith.constant 0 : i32
    %c0_i32_0 = arith.constant 0 : i32
    %c0_i32_1 = arith.constant 0 : i32
    return %c0_i32, %c0_i32_0 : i32, i32
  }
  func.func @transform_3(%arg0: i32) -> (i32, i32) {
    %c0_i32 = arith.constant 0 : i32
    %c0_i32_0 = arith.constant 0 : i32
    %c0_i32_1 = arith.constant 0 : i32
    return %c0_i32, %c0_i32_0 : i32, i32
  }
  func.func @transform_4(%arg0: i32) -> (i32, i32, i32) {
    %c0_i32 = arith.constant 0 : i32
    %c0_i32_0 = arith.constant 0 : i32
    %c0_i32_1 = arith.constant 0 : i32
    return %arg0, %c0_i32, %c0_i32_0 : i32, i32, i32
  }
}

</mosaic_0001>

<llo_original>
// kernel: tpu_custom_call.1
$region0: #{tpu_custom_call.1}
  #allocation0 [shape = 'u32[]', space=smem, size = 0x4, offset = 0x4, fixed_abs, tag = 'smem constant byte address 0x4 - core index']
  #allocation1 [shape = 'u32[144,128]{1,0:T(1,128)}', space=vmem, size = 0x12000, scoped, tag = 'internal scratch']
  %s0 = inlined_call_operand.hbm [shape: f32[2,8,256], index: 0, kind: input, shape index: {}]
  %s1 = inlined_call_operand.hbm [shape: f32[2,1,8], index: 1, kind: input, shape index: {}]
  %s2 = inlined_call_operand.hbm [shape: bf16[256,2432], index: 2, kind: input, shape index: {}]
  %s3 = inlined_call_operand.hbm [shape: f32[8,768], index: 3, kind: input, shape index: {}]
  %s4 = inlined_call_operand.hbm [shape: f32[2,8,128], index: 4, kind: output, shape index: {}]
  %s5 = sld [smem:[#allocation0]]
  $region65: #{tpu_custom_call.1} parent=0
    _
  %s7 = ssub.s32 1, %s5
  %s8 = scalar_select 0, %s7, %s5
  $region1: #{tpu_custom_call.1} parent=0
    #allocation2 [shape = 'u8[16384]{0}', space=vmem, size = 0x4000, scoped, tag = 'input window, operand 0']
    #allocation3 [shape = 's32[2]{0}', space=sflag, size = 0x8, scoped, tag = 'scoped memory for tpu_custom_call.1']
    #allocation4 [shape = 's32[2]{0}', space=sflag, size = 0x8, scoped, tag = 'scoped memory for tpu_custom_call.1']
    #allocation5 [shape = 'u8[1024]{0}', space=vmem, size = 0x400, scoped, tag = 'input window, operand 1']
    #allocation6 [shape = 's32[2]{0}', space=sflag, size = 0x8, scoped, tag = 'scoped memory for tpu_custom_call.1']
    #allocation7 [shape = 'u8[1245184]{0}', space=vmem, size = 0x130000, scoped, tag = 'input window, operand 2, single buffered']
    #allocation8 [shape = 'u8[24576]{0}', space=vmem, size = 0x6000, scoped, tag = 'input window, operand 3, single buffered']
    #allocation9 [shape = 's32[1]{0}', space=sflag, size = 0x4, scoped, tag = 'scoped memory for tpu_custom_call.1']
    #allocation10 [shape = 'u8[8192]{0}', space=vmem, size = 0x2000, scoped, tag = 'output window, operand 0']
    %9 = vsyncpa [#allocation3], 0
    %s10 = scalar_lea.sflag [#allocation3], 1
    %11 = vsyncpa %s10, 0
    %12 = vsyncpa [#allocation6], 0
    %s13 = scalar_lea.sflag [#allocation6], 1
    %14 = vsyncpa %s13, 0
    %15 = vsyncpa [#allocation9], 0
    %16 = vsyncpa [#allocation4], 0
    %s17 = scalar_lea.sflag [#allocation4], 1
    %18 = vsyncpa %s17, 0
    loop: start=0, step=1, limit=4
    $region2: #{tpu_custom_call.1} parent=1 // loop_pre_header
      _
    $region3: #{tpu_custom_call.1} parent=1 // loop_header
      %s20 = sphi 0, %s24
      %p21 = scmp.ge.s32.totalorder %s20, 4
      %s30 = sphi 0, %s32
      %s33 = sphi 0, %s30
      %s34 = sphi 0, %s33
      %s50 = sphi 0, %s34
      %s56 = sphi 0, %s58
      %s59 = sphi 0, %s56
      %s60 = sphi 0, %s59
      %s76 = sphi 0, %s60
      %s80 = sphi 0, %s80
      %s82 = sphi 0, %s80
      %s83 = sphi 0, %s82
      %s97 = sphi 0, %s83
      %s101 = sphi 0, %s101
      %s103 = sphi 0, %s101
      %s104 = sphi 0, %s103
      %s118 = sphi 0, %s104
      %s124 = sphi 0, %s126
      %s127 = sphi 0, %s124
      %s128 = sphi 0, %s127
      %s144 = sphi 0, %s128
    $region4: #{tpu_custom_call.1} parent=1 // loop_header_branch
      %23 = sbr.rel (%p21) target = $region8
    $region5: #{tpu_custom_call.1} parent=1 // loop_body
      %s25 = ssub.s32 %s20, 1
      %s26 = ssub.s32 %s20, 2
      %s27 = sadd.s32 %s20, 1
      %s28 = ssub.s32 %s20, %s27
      %p29 = scmp.eq.s32.totalorder %s28, 0
      %s31 = sadd.s32 %s30, 1
      %s32 = scalar_select %p29, %s30, %s31
      %p35 = pneg %p29
      %p36 = scmp.eq.s32.totalorder %s20, 1
      %p37 = por %p35, %p36
      %p38 = scmp.ne.s32.totalorder %s30, %s33
      %p39 = scmp.eq.s32.totalorder %s20, 0
      %p40 = por %p38, %p39
      %p41 = scmp.ne.s32.totalorder %s30, %s33
      %p42 = scmp.eq.s32.totalorder %s25, 1
      %p43 = por %p41, %p42
      %p44 = scmp.ne.s32.totalorder %s33, %s34
      %p45 = scmp.eq.s32.totalorder %s25, 0
      %p46 = por %p44, %p45
      %p47 = scmp.ne.s32.totalorder %s33, %s34
      %p48 = scmp.eq.s32.totalorder %s26, 1
      %p49 = por %p47, %p48
      %p51 = scmp.ne.s32.totalorder %s34, %s50
      %p52 = scmp.eq.s32.totalorder %s26, 0
      %p53 = por %p51, %p52
      %s54 = ssub.s32 %s20, %s27
      %p55 = scmp.eq.s32.totalorder %s54, 0
      %s57 = sadd.s32 %s56, 1
      %s58 = scalar_select %p55, %s56, %s57
      %p61 = pneg %p55
      %p62 = scmp.eq.s32.totalorder %s20, 1
      %p63 = por %p61, %p62
      %p64 = scmp.ne.s32.totalorder %s56, %s59
      %p65 = scmp.eq.s32.totalorder %s20, 0
      %p66 = por %p64, %p65
      %p67 = scmp.ne.s32.totalorder %s56, %s59
      %p68 = scmp.eq.s32.totalorder %s25, 1
      %p69 = por %p67, %p68
      %p70 = scmp.ne.s32.totalorder %s59, %s60
      %p71 = scmp.eq.s32.totalorder %s25, 0
      %p72 = por %p70, %p71
      %p73 = scmp.ne.s32.totalorder %s59, %s60
      %p74 = scmp.eq.s32.totalorder %s26, 1
      %p75 = por %p73, %p74
      %p77 = scmp.ne.s32.totalorder %s60, %s76
      %p78 = scmp.eq.s32.totalorder %s26, 0
      %p79 = por %p77, %p78
      %s81 = sadd.s32 %s80, 1
      %p84 = scmp.eq.s32.totalorder %s20, 1
      %p85 = scmp.ne.s32.totalorder %s80, %s82
      %p86 = scmp.eq.s32.totalorder %s20, 0
      %p87 = por %p85, %p86
      %p88 = scmp.ne.s32.totalorder %s80, %s82
      %p89 = scmp.eq.s32.totalorder %s25, 1
      %p90 = por %p88, %p89
      %p91 = scmp.ne.s32.totalorder %s82, %s83
      %p92 = scmp.eq.s32.totalorder %s25, 0
      %p93 = por %p91, %p92
      %p94 = scmp.ne.s32.totalorder %s82, %s83
      %p95 = scmp.eq.s32.totalorder %s26, 1
      %p96 = por %p94, %p95
      %p98 = scmp.ne.s32.totalorder %s83, %s97
      %p99 = scmp.eq.s32.totalorder %s26, 0
      %p100 = por %p98, %p99
      %s102 = sadd.s32 %s101, 1
      %p105 = scmp.eq.s32.totalorder %s20, 1
      %p106 = scmp.ne.s32.totalorder %s101, %s103
      %p107 = scmp.eq.s32.totalorder %s20, 0
      %p108 = por %p106, %p107
      %p109 = scmp.ne.s32.totalorder %s101, %s103
      %p110 = scmp.eq.s32.totalorder %s25, 1
      %p111 = por %p109, %p110
      %p112 = scmp.ne.s32.totalorder %s103, %s104
      %p113 = scmp.eq.s32.totalorder %s25, 0
      %p114 = por %p112, %p113
      %p115 = scmp.ne.s32.totalorder %s103, %s104
      %p116 = scmp.eq.s32.totalorder %s26, 1
      %p117 = por %p115, %p116
      %p119 = scmp.ne.s32.totalorder %s104, %s118
      %p120 = scmp.eq.s32.totalorder %s26, 0
      %p121 = por %p119, %p120
      %s122 = ssub.s32 %s20, %s27
      %p123 = scmp.eq.s32.totalorder %s122, 0
      %s125 = sadd.s32 %s124, 1
      %s126 = scalar_select %p123, %s124, %s125
      %p129 = pneg %p123
      %p130 = scmp.eq.s32.totalorder %s20, 1
      %p131 = por %p129, %p130
      %p132 = scmp.ne.s32.totalorder %s124, %s127
      %p133 = scmp.eq.s32.totalorder %s20, 0
      %p134 = por %p132, %p133
      %p135 = scmp.ne.s32.totalorder %s124, %s127
      %p136 = scmp.eq.s32.totalorder %s25, 1
      %p137 = por %p135, %p136
      %p138 = scmp.ne.s32.totalorder %s127, %s128
      %p139 = scmp.eq.s32.totalorder %s25, 0
      %p140 = por %p138, %p139
      %p141 = scmp.ne.s32.totalorder %s127, %s128
      %p142 = scmp.eq.s32.totalorder %s26, 1
      %p143 = por %p141, %p142
      %p145 = scmp.ne.s32.totalorder %s128, %s144
      %p146 = scmp.eq.s32.totalorder %s26, 0
      %p147 = por %p145, %p146
      %p148 = scmp.le.s32.totalorder 1, %s20
      %p149 = scmp.lt.s32.totalorder %s20, 3
      %p150 = pnand %p148, %p149
      %p151 = pneg %p150
      // Predicated region
      $region9: #{tpu_custom_call.1} parent=5 // pred_check
        _
      $region10: #{tpu_custom_call.1} parent=5 // pred_check_branch
        %153 = sbr.rel (%p150) target = $region12
      $region11: #{tpu_custom_call.1} parent=5 // pred_region
        %s154 = ssub.s32 %s20, 1
        // Predicated region
        $region13: #{tpu_custom_call.1} parent=11 // pred_check
          %p155 = pneg %p93
        $region14: #{tpu_custom_call.1} parent=11 // pred_check_branch
          %157 = sbr.rel (%p155) target = $region16
        $region15: #{tpu_custom_call.1} parent=11 // pred_region
          %s159 = ssub.s32 38912, 38912
          %160 = vsyncadd [#allocation6], %s159
          %s161 = sshll.u32 [#allocation7], 4
          %s162 = int_to_ptr.vmem [resolvable:$true] %s161
          %167 = dma.hbm_to_vmem [thread:$0]  %s2, 38912, %s162, [#allocation6], 1216, 1216, 76
        $region16: #{tpu_custom_call.1} parent=11 // pred_fallthru
          _
        // Predicated region
        $region17: #{tpu_custom_call.1} parent=11 // pred_check
          %p168 = pneg %p114
        $region18: #{tpu_custom_call.1} parent=11 // pred_check_branch
          %170 = sbr.rel (%p168) target = $region20
        $region19: #{tpu_custom_call.1} parent=11 // pred_region
          %s172 = ssub.s32 768, 768
          %173 = vsyncadd [#allocation9], %s172
          %s175 = sshll.u32 [#allocation8], 4
          %s176 = int_to_ptr.vmem [resolvable:$true] %s175
          %178 = dma.hbm_to_vmem [thread:$0]  %s3, 768, %s176, [#allocation9]
        $region20: #{tpu_custom_call.1} parent=11 // pred_fallthru
          _
      $region12: #{tpu_custom_call.1} parent=5 // pred_fallthru
        _
      %p179 = scmp.lt.s32.totalorder %s20, 2
      // Predicated region
      $region21: #{tpu_custom_call.1} parent=5 // pred_check
        %p180 = pneg %p179
      $region22: #{tpu_custom_call.1} parent=5 // pred_check_branch
        %182 = sbr.rel (%p180) target = $region24
      $region23: #{tpu_custom_call.1} parent=5 // pred_region
        // Predicated region
        $region25: #{tpu_custom_call.1} parent=23 // pred_check
          %p183 = pneg %p40
        $region26: #{tpu_custom_call.1} parent=23 // pred_check_branch
          %185 = sbr.rel (%p183) target = $region28
        $region27: #{tpu_custom_call.1} parent=23 // pred_region
          %s186 = sand.u32 %s30, 1
          %s187 = scalar_lea.sflag [#allocation3], %s186
          %s188 = sand.u32 %s30, 1
          %s189 = smul.addr %s188, 16
          %s190 = scalar_lea.vmem [#allocation2], %s189
          %s192 = ssub.s32 256, 256
          %193 = vsyncadd %s187, %s192
          %s194 = smul.addr %s20, 2
          %s195 = smul.addr %s194, 128
          %s196 = scalar_lea.hbm %s0, %s195
          %s198 = sshll.u32 %s190, 4
          %s199 = int_to_ptr.vmem [resolvable:$true] %s198
          %201 = dma.hbm_to_vmem [thread:$0]  %s196, 256, %s199, %s187
        $region28: #{tpu_custom_call.1} parent=23 // pred_fallthru
          _
        // Predicated region
        $region29: #{tpu_custom_call.1} parent=23 // pred_check
          %p202 = pneg %p66
        $region30: #{tpu_custom_call.1} parent=23 // pred_check_branch
          %204 = sbr.rel (%p202) target = $region32
        $region31: #{tpu_custom_call.1} parent=23 // pred_region
          %s205 = sand.u32 %s20, 1
          %s206 = scalar_lea.sflag [#allocation6], %s205
          %s207 = sand.u32 %s56, 1
          %s208 = scalar_lea.vmem [#allocation5], %s207
          %s210 = ssub.s32 16, 16
          %211 = vsyncadd %s206, %s210
          %s212 = smul.addr %s20, 16
          %s213 = scalar_lea.hbm %s1, %s212
          %s215 = sshll.u32 %s208, 4
          %s216 = int_to_ptr.vmem [resolvable:$true] %s215
          %218 = dma.hbm_to_vmem [thread:$0]  %s213, 16, %s216, %s206
        $region32: #{tpu_custom_call.1} parent=23 // pred_fallthru
          _
      $region24: #{tpu_custom_call.1} parent=5 // pred_fallthru
        _
      %p219 = scmp.le.s32.totalorder 1, %s20
      %p220 = scmp.lt.s32.totalorder %s20, 3
      %p221 = pnand %p219, %p220
      %p222 = pneg %p221
      // Predicated region
      $region33: #{tpu_custom_call.1} parent=5 // pred_check
        _
      $region34: #{tpu_custom_call.1} parent=5 // pred_check_branch
        %224 = sbr.rel (%p221) target = $region36
      $region35: #{tpu_custom_call.1} parent=5 // pred_region
        %s225 = ssub.s32 %s20, 1
        %s226 = sand.u32 %s33, 1
        %s227 = scalar_lea.sflag [#allocation3], %s226
        %s228 = sand.u32 %s33, 1
        %s229 = smul.addr %s228, 16
        %s230 = scalar_lea.vmem [#allocation2], %s229
        // Predicated region
        $region37: #{tpu_custom_call.1} parent=35 // pred_check
          %p231 = pneg %p46
        $region38: #{tpu_custom_call.1} parent=35 // pred_check_branch
          %233 = sbr.rel (%p231) target = $region40
        $region39: #{tpu_custom_call.1} parent=35 // pred_region
          %234 = dma.done %s227, 256
        $region40: #{tpu_custom_call.1} parent=35 // pred_fallthru
          _
        %s235 = sand.u32 %s25, 1
        %s236 = scalar_lea.sflag [#allocation6], %s235
        %s237 = sand.u32 %s59, 1
        %s238 = scalar_lea.vmem [#allocation5], %s237
        // Predicated region
        $region41: #{tpu_custom_call.1} parent=35 // pred_check
          %p239 = pneg %p72
        $region42: #{tpu_custom_call.1} parent=35 // pred_check_branch
          %241 = sbr.rel (%p239) target = $region44
        $region43: #{tpu_custom_call.1} parent=35 // pred_region
          %242 = dma.done %s236, 16
        $region44: #{tpu_custom_call.1} parent=35 // pred_fallthru
          _
        // Predicated region
        $region45: #{tpu_custom_call.1} parent=35 // pred_check
          %p243 = pneg %p93
        $region46: #{tpu_custom_call.1} parent=35 // pred_check_branch
          %245 = sbr.rel (%p243) target = $region48
        $region47: #{tpu_custom_call.1} parent=35 // pred_region
          %246 = dma.done [#allocation6], 38912
        $region48: #{tpu_custom_call.1} parent=35 // pred_fallthru
          _
        // Predicated region
        $region49: #{tpu_custom_call.1} parent=35 // pred_check
          %p247 = pneg %p114
        $region50: #{tpu_custom_call.1} parent=35 // pred_check_branch
          %249 = sbr.rel (%p247) target = $region52
        $region51: #{tpu_custom_call.1} parent=35 // pred_region
          %250 = dma.done [#allocation9], 768
        $region52: #{tpu_custom_call.1} parent=35 // pred_fallthru
          _
        %s251 = sand.u32 %s33, 1
        %s252 = scalar_lea.sflag [#allocation3], %s251
        %s253 = sand.u32 %s33, 1
        %s254 = smul.addr %s253, 16
        %s255 = scalar_lea.vmem [#allocation2], %s254
        %p256 = pneg %p46
        %p257 = pneg %p43
        %s258 = sand.u32 %s25, 1
        %s259 = scalar_lea.sflag [#allocation6], %s258
        %s260 = sand.u32 %s59, 1
        %s261 = scalar_lea.vmem [#allocation5], %s260
        %p262 = pneg %p72
        %p263 = pneg %p69
        %p264 = pneg %p93
        %p265 = pneg %p90
        %p266 = pneg %p114
        %p267 = pneg %p111
        %p268 = pneg %p140
        %p269 = pneg %p137
        %s270 = sand.u32 %s127, 1
        %s271 = scalar_lea.sflag [#allocation4], %s270
        %s272 = sand.u32 %s127, 1
        %s273 = smul.addr %s272, 8
        %s274 = scalar_lea.vmem [#allocation10], %s273
        %v276 = vld [vmem:[%s230] sm:$0xff]
        %v277 = vld [vmem:[%s230 + $0x8] sm:$0xff]
        %v278 = vld [vmem:[%s238] sm:$0x1]
        %v279 = vld [vmem:[#allocation8] sm:$0xff]
        %v280 = vld [vmem:[#allocation8 + $0x8] sm:$0xff]
        %v281 = vld [vmem:[#allocation8 + $0x10] sm:$0xff]
        %v282 = vld [vmem:[#allocation8 + $0x18] sm:$0xff]
        %v283 = vld [vmem:[#allocation8 + $0x20] sm:$0xff]
        %v284 = vld [vmem:[#allocation8 + $0x28] sm:$0xff]
        %v285 = vadd.f32 %v276, %v277
        %286 = vadd.xlane.f32.xlu0 %v285
        %v287 = vpop.xlane.xlu0 %286
        %v288 = vrcp.pop 256.0
        %v289 = vmul.f32 %v287, %v288
        %v290 = vsub.f32 %v276, %v289
        %v291 = vsub.f32 %v277, %v289
        %v292 = vmul.f32 %v290, %v290
        %v293 = vmul.f32 %v291, %v291
        %v294 = vadd.f32 %v292, %v293
        %295 = vadd.xlane.f32.xlu0 %v294
        %v296 = vpop.xlane.xlu0 %295
        %v297 = vmul.f32 %v296, %v288
        %v298 = vadd.f32 %v297, 1e-12
        %v299 = vrsqrt.pop %v298
        %v300 = vmul.f32 %v290, %v299
        %v301 = vmul.f32 %v291, %v299
        %v302 = vlaneseq
        %v303 = vshrl.u32 %v302, 7
        %v304 = vsub.s32 3, %v303
        %v305 = vrot.slane %v279, %v304
        %v306 = vlaneseq
        %v307 = vshrl.u32 %v306, 7
        %v308 = vsub.s32 3, %v307
        %v309 = vrot.slane %v280, %v308
        %v310 = vmul.f32 %v300, %v305
        %v311 = vmul.f32 %v301, %v309
        %v312 = vlaneseq
        %v313 = vshrl.u32 %v312, 7
        %v314 = vsub.s32 3, %v313
        %v315 = vrot.slane %v281, %v314
        %v316 = vlaneseq
        %v317 = vshrl.u32 %v316, 7
        %v318 = vsub.s32 3, %v317
        %v319 = vrot.slane %v282, %v318
        %v320 = vadd.f32 %v310, %v315
        %v321 = vadd.f32 %v311, %v319
        %v322 = vpack.c.bf16 %v320, %v320
        %v323 = vpack.c.bf16 %v321, %v321
        %v324 = vld [vmem:[#allocation7] sm:$0xff]
        %v325 = vld [vmem:[#allocation7 + $0x8] sm:$0xff]
        %v326 = vld [vmem:[#allocation7 + $0x10] sm:$0xff]
        %v327 = vld [vmem:[#allocation7 + $0x4c] sm:$0xff]
        %v328 = vld [vmem:[#allocation7 + $0x54] sm:$0xff]
        %v329 = vld [vmem:[#allocation7 + $0x5c] sm:$0xff]
        %v330 = vld [vmem:[#allocation7 + $0x98] sm:$0xff]
        %v331 = vld [vmem:[#allocation7 + $0xa0] sm:$0xff]
        %v332 = vld [vmem:[#allocation7 + $0xa8] sm:$0xff]
        %v333 = vld [vmem:[#allocation7 + $0xe4] sm:$0xff]
        %v334 = vld [vmem:[#allocation7 + $0xec] sm:$0xff]
        %v335 = vld [vmem:[#allocation7 + $0xf4] sm:$0xff]
        %v336 = vld [vmem:[#allocation7 + $0x130] sm:$0xff]
        %v337 = vld [vmem:[#allocation7 + $0x138] sm:$0xff]
        %v338 = vld [vmem:[#allocation7 + $0x140] sm:$0xff]
        %v339 = vld [vmem:[#allocation7 + $0x17c] sm:$0xff]
        %v340 = vld [vmem:[#allocation7 + $0x184] sm:$0xff]
        %v341 = vld [vmem:[#allocation7 + $0x18c] sm:$0xff]
        %v342 = vld [vmem:[#allocation7 + $0x1c8] sm:$0xff]
        %v343 = vld [vmem:[#allocation7 + $0x1d0] sm:$0xff]
        %v344 = vld [vmem:[#allocation7 + $0x1d8] sm:$0xff]
        %v345 = vld [vmem:[#allocation7 + $0x214] sm:$0xff]
        %v346 = vld [vmem:[#allocation7 + $0x21c] sm:$0xff]
        %v347 = vld [vmem:[#allocation7 + $0x224] sm:$0xff]
        %v348 = vld [vmem:[#allocation7 + $0x260] sm:$0xff]
        %v349 = vld [vmem:[#allocation7 + $0x268] sm:$0xff]
        %v350 = vld [vmem:[#allocation7 + $0x270] sm:$0xff]
        %v351 = vld [vmem:[#allocation7 + $0x2ac] sm:$0xff]
        %v352 = vld [vmem:[#allocation7 + $0x2b4] sm:$0xff]
        %v353 = vld [vmem:[#allocation7 + $0x2bc] sm:$0xff]
        %v354 = vld [vmem:[#allocation7 + $0x2f8] sm:$0xff]
        %v355 = vld [vmem:[#allocation7 + $0x300] sm:$0xff]
        %v356 = vld [vmem:[#allocation7 + $0x308] sm:$0xff]
        %v357 = vld [vmem:[#allocation7 + $0x344] sm:$0xff]
        %v358 = vld [vmem:[#allocation7 + $0x34c] sm:$0xff]
        %v359 = vld [vmem:[#allocation7 + $0x354] sm:$0xff]
        %v360 = vld [vmem:[#allocation7 + $0x390] sm:$0xff]
        %v361 = vld [vmem:[#allocation7 + $0x398] sm:$0xff]
        %v362 = vld [vmem:[#allocation7 + $0x3a0] sm:$0xff]
        %v363 = vld [vmem:[#allocation7 + $0x3dc] sm:$0xff]
        %v364 = vld [vmem:[#allocation7 + $0x3e4] sm:$0xff]
        %v365 = vld [vmem:[#allocation7 + $0x3ec] sm:$0xff]
        %v366 = vld [vmem:[#allocation7 + $0x428] sm:$0xff]
        %v367 = vld [vmem:[#allocation7 + $0x430] sm:$0xff]
        %v368 = vld [vmem:[#allocation7 + $0x438] sm:$0xff]
        %v369 = vld [vmem:[#allocation7 + $0x474] sm:$0xff]
        %v370 = vld [vmem:[#allocation7 + $0x47c] sm:$0xff]
        %v371 = vld [vmem:[#allocation7 + $0x484] sm:$0xff]
        %v372 = vld [vmem:[#allocation7 + $0x4c0] sm:$0xff]
        %v373 = vld [vmem:[#allocation7 + $0x4c8] sm:$0xff]
        %v374 = vld [vmem:[#allocation7 + $0x4d0] sm:$0xff]
        %v375 = vld [vmem:[#allocation7 + $0x50c] sm:$0xff]
        %v376 = vld [vmem:[#allocation7 + $0x514] sm:$0xff]
        %v377 = vld [vmem:[#allocation7 + $0x51c] sm:$0xff]
        %v378 = vld [vmem:[#allocation7 + $0x558] sm:$0xff]
        %v379 = vld [vmem:[#allocation7 + $0x560] sm:$0xff]
        %v380 = vld [vmem:[#allocation7 + $0x568] sm:$0xff]
        %v381 = vld [vmem:[#allocation7 + $0x5a4] sm:$0xff]
        %v382 = vld [vmem:[#allocation7 + $0x5ac] sm:$0xff]
        %v383 = vld [vmem:[#allocation7 + $0x5b4] sm:$0xff]
        %v384 = vld [vmem:[#allocation7 + $0x5f0] sm:$0xff]
        %v385 = vld [vmem:[#allocation7 + $0x5f8] sm:$0xff]
        %v386 = vld [vmem:[#allocation7 + $0x600] sm:$0xff]
        %v387 = vld [vmem:[#allocation7 + $0x63c] sm:$0xff]
        %v388 = vld [vmem:[#allocation7 + $0x644] sm:$0xff]
        %v389 = vld [vmem:[#allocation7 + $0x64c] sm:$0xff]
        %v390 = vld [vmem:[#allocation7 + $0x688] sm:$0xff]
        %v391 = vld [vmem:[#allocation7 + $0x690] sm:$0xff]
        %v392 = vld [vmem:[#allocation7 + $0x698] sm:$0xff]
        %v393 = vld [vmem:[#allocation7 + $0x6d4] sm:$0xff]
        %v394 = vld [vmem:[#allocation7 + $0x6dc] sm:$0xff]
        %v395 = vld [vmem:[#allocation7 + $0x6e4] sm:$0xff]
        %v396 = vld [vmem:[#allocation7 + $0x720] sm:$0xff]
        %v397 = vld [vmem:[#allocation7 + $0x728] sm:$0xff]
        %v398 = vld [vmem:[#allocation7 + $0x730] sm:$0xff]
        %v399 = vld [vmem:[#allocation7 + $0x76c] sm:$0xff]
        %v400 = vld [vmem:[#allocation7 + $0x774] sm:$0xff]
        %v401 = vld [vmem:[#allocation7 + $0x77c] sm:$0xff]
        %v402 = vld [vmem:[#allocation7 + $0x7b8] sm:$0xff]
        %v403 = vld [vmem:[#allocation7 + $0x7c0] sm:$0xff]
        %v404 = vld [vmem:[#allocation7 + $0x7c8] sm:$0xff]
        %v405 = vld [vmem:[#allocation7 + $0x804] sm:$0xff]
        %v406 = vld [vmem:[#allocation7 + $0x80c] sm:$0xff]
        %v407 = vld [vmem:[#allocation7 + $0x814] sm:$0xff]
        %v408 = vld [vmem:[#allocation7 + $0x850] sm:$0xff]
        %v409 = vld [vmem:[#allocation7 + $0x858] sm:$0xff]
        %v410 = vld [vmem:[#allocation7 + $0x860] sm:$0xff]
        %v411 = vld [vmem:[#allocation7 + $0x89c] sm:$0xff]
        %v412 = vld [vmem:[#allocation7 + $0x8a4] sm:$0xff]
        %v413 = vld [vmem:[#allocation7 + $0x8ac] sm:$0xff]
        %v414 = vld [vmem:[#allocation7 + $0x8e8] sm:$0xff]
        %v415 = vld [vmem:[#allocation7 + $0x8f0] sm:$0xff]
        %v416 = vld [vmem:[#allocation7 + $0x8f8] sm:$0xff]
        %v417 = vld [vmem:[#allocation7 + $0x934] sm:$0xff]
        %v418 = vld [vmem:[#allocation7 + $0x93c] sm:$0xff]
        %v419 = vld [vmem:[#allocation7 + $0x944] sm:$0xff]
        %v420 = vlaneseq
        %v421 = vshrl.u32 %v420, 7
        %v422 = vsub.s32 0, %v421
        %v423 = vrot.slane %v279, %v422
        %v424 = vlaneseq
        %v425 = vshrl.u32 %v424, 7
        %v426 = vsub.s32 0, %v425
        %v427 = vrot.slane %v280, %v426
        %v428 = vlaneseq
        %v429 = vshrl.u32 %v428, 7
        %v430 = vsub.s32 0, %v429
        %v431 = vrot.slane %v281, %v430
        %v432 = vlaneseq
        %v433 = vshrl.u32 %v432, 7
        %v434 = vsub.s32 0, %v433
        %v435 = vrot.slane %v282, %v434
        %v436 = vlaneseq
        %v437 = vshrl.u32 %v436, 7
        %v438 = vsub.s32 0, %v437
        %v439 = vrot.slane %v283, %v438
        %v440 = vlaneseq
        %v441 = vshrl.u32 %v440, 7
        %v442 = vsub.s32 0, %v441
        %v443 = vrot.slane %v284, %v442
        %v540 = vunpack.c.l.b16 %v324
        %v541 = vunpack.c.h.b16 %v324
        %v542 = vunpack.c.l.b16 %v325
        %v543 = vunpack.c.h.b16 %v325
        %v544 = vunpack.c.l.b16 %v326
        %v545 = vunpack.c.h.b16 %v326
        %v546 = vunpack.c.l.b16 %v327
        %v547 = vunpack.c.h.b16 %v327
        %v548 = vunpack.c.l.b16 %v328
        %v549 = vunpack.c.h.b16 %v328
        %v550 = vunpack.c.l.b16 %v329
        %v551 = vunpack.c.h.b16 %v329
        %v552 = vunpack.c.l.b16 %v330
        %v553 = vunpack.c.h.b16 %v330
        %v554 = vunpack.c.l.b16 %v331
        %v555 = vunpack.c.h.b16 %v331
        %v556 = vunpack.c.l.b16 %v332
        %v557 = vunpack.c.h.b16 %v332
        %v558 = vunpack.c.l.b16 %v333
        %v559 = vunpack.c.h.b16 %v333
        %v560 = vunpack.c.l.b16 %v334
        %v561 = vunpack.c.h.b16 %v334
        %v562 = vunpack.c.l.b16 %v335
        %v563 = vunpack.c.h.b16 %v335
        %v564 = vunpack.c.l.b16 %v336
        %v565 = vunpack.c.h.b16 %v336
        %v566 = vunpack.c.l.b16 %v337
        %v567 = vunpack.c.h.b16 %v337
        %v568 = vunpack.c.l.b16 %v338
        %v569 = vunpack.c.h.b16 %v338
        %v570 = vunpack.c.l.b16 %v339
        %v571 = vunpack.c.h.b16 %v339
        %v572 = vunpack.c.l.b16 %v340
        %v573 = vunpack.c.h.b16 %v340
        %v574 = vunpack.c.l.b16 %v341
        %v575 = vunpack.c.h.b16 %v341
        %v576 = vunpack.c.l.b16 %v342
        %v577 = vunpack.c.h.b16 %v342
        %v578 = vunpack.c.l.b16 %v343
        %v579 = vunpack.c.h.b16 %v343
        %v580 = vunpack.c.l.b16 %v344
        %v581 = vunpack.c.h.b16 %v344
        %v582 = vunpack.c.l.b16 %v345
        %v583 = vunpack.c.h.b16 %v345
        %v584 = vunpack.c.l.b16 %v346
        %v585 = vunpack.c.h.b16 %v346
        %v586 = vunpack.c.l.b16 %v347
        %v587 = vunpack.c.h.b16 %v347
        %v588 = vunpack.c.l.b16 %v348
        %v589 = vunpack.c.h.b16 %v348
        %v590 = vunpack.c.l.b16 %v349
        %v591 = vunpack.c.h.b16 %v349
        %v592 = vunpack.c.l.b16 %v350
        %v593 = vunpack.c.h.b16 %v350
        %v594 = vunpack.c.l.b16 %v351
        %v595 = vunpack.c.h.b16 %v351
        %v596 = vunpack.c.l.b16 %v352
        %v597 = vunpack.c.h.b16 %v352
        %v598 = vunpack.c.l.b16 %v353
        %v599 = vunpack.c.h.b16 %v353
        %v600 = vunpack.c.l.b16 %v354
        %v601 = vunpack.c.h.b16 %v354
        %v602 = vunpack.c.l.b16 %v355
        %v603 = vunpack.c.h.b16 %v355
        %v604 = vunpack.c.l.b16 %v356
        %v605 = vunpack.c.h.b16 %v356
        %v606 = vunpack.c.l.b16 %v357
        %v607 = vunpack.c.h.b16 %v357
        %v608 = vunpack.c.l.b16 %v358
        %v609 = vunpack.c.h.b16 %v358
        %v610 = vunpack.c.l.b16 %v359
        %v611 = vunpack.c.h.b16 %v359
        %v612 = vunpack.c.l.b16 %v360
        %v613 = vunpack.c.h.b16 %v360
        %v614 = vunpack.c.l.b16 %v361
        %v615 = vunpack.c.h.b16 %v361
        %v616 = vunpack.c.l.b16 %v362
        %v617 = vunpack.c.h.b16 %v362
        %v618 = vunpack.c.l.b16 %v363
        %v619 = vunpack.c.h.b16 %v363
        %v620 = vunpack.c.l.b16 %v364
        %v621 = vunpack.c.h.b16 %v364
        %v622 = vunpack.c.l.b16 %v365
        %v623 = vunpack.c.h.b16 %v365
        %v624 = vunpack.c.l.b16 %v366
        %v625 = vunpack.c.h.b16 %v366
        %v626 = vunpack.c.l.b16 %v367
        %v627 = vunpack.c.h.b16 %v367
        %v628 = vunpack.c.l.b16 %v368
        %v629 = vunpack.c.h.b16 %v368
        %v630 = vunpack.c.l.b16 %v369
        %v631 = vunpack.c.h.b16 %v369
        %v632 = vunpack.c.l.b16 %v370
        %v633 = vunpack.c.h.b16 %v370
        %v634 = vunpack.c.l.b16 %v371
        %v635 = vunpack.c.h.b16 %v371
        %v636 = vunpack.c.l.b16 %v372
        %v637 = vunpack.c.h.b16 %v372
        %v638 = vunpack.c.l.b16 %v373
        %v639 = vunpack.c.h.b16 %v373
        %v640 = vunpack.c.l.b16 %v374
        %v641 = vunpack.c.h.b16 %v374
        %v642 = vunpack.c.l.b16 %v375
        %v643 = vunpack.c.h.b16 %v375
        %v644 = vunpack.c.l.b16 %v376
        %v645 = vunpack.c.h.b16 %v376
        %v646 = vunpack.c.l.b16 %v377
        %v647 = vunpack.c.h.b16 %v377
        %v648 = vunpack.c.l.b16 %v378
        %v649 = vunpack.c.h.b16 %v378
        %v650 = vunpack.c.l.b16 %v379
        %v651 = vunpack.c.h.b16 %v379
        %v652 = vunpack.c.l.b16 %v380
        %v653 = vunpack.c.h.b16 %v380
        %v654 = vunpack.c.l.b16 %v381
        %v655 = vunpack.c.h.b16 %v381
        %v656 = vunpack.c.l.b16 %v382
        %v657 = vunpack.c.h.b16 %v382
        %v658 = vunpack.c.l.b16 %v383
        %v659 = vunpack.c.h.b16 %v383
        %v660 = vunpack.c.l.b16 %v384
        %v661 = vunpack.c.h.b16 %v384
        %v662 = vunpack.c.l.b16 %v385
        %v663 = vunpack.c.h.b16 %v385
        %v664 = vunpack.c.l.b16 %v386
        %v665 = vunpack.c.h.b16 %v386
        %v666 = vunpack.c.l.b16 %v387
        %v667 = vunpack.c.h.b16 %v387
        %v668 = vunpack.c.l.b16 %v388
        %v669 = vunpack.c.h.b16 %v388
        %v670 = vunpack.c.l.b16 %v389
        %v671 = vunpack.c.h.b16 %v389
        %v672 = vunpack.c.l.b16 %v390
        %v673 = vunpack.c.h.b16 %v390
        %v674 = vunpack.c.l.b16 %v391
        %v675 = vunpack.c.h.b16 %v391
        %v676 = vunpack.c.l.b16 %v392
        %v677 = vunpack.c.h.b16 %v392
        %v678 = vunpack.c.l.b16 %v393
        %v679 = vunpack.c.h.b16 %v393
        %v680 = vunpack.c.l.b16 %v394
        %v681 = vunpack.c.h.b16 %v394
        %v682 = vunpack.c.l.b16 %v395
        %v683 = vunpack.c.h.b16 %v395
        %v684 = vunpack.c.l.b16 %v396
        %v685 = vunpack.c.h.b16 %v396
        %v686 = vunpack.c.l.b16 %v397
        %v687 = vunpack.c.h.b16 %v397
        %v688 = vunpack.c.l.b16 %v398
        %v689 = vunpack.c.h.b16 %v398
        %v690 = vunpack.c.l.b16 %v399
        %v691 = vunpack.c.h.b16 %v399
        %v692 = vunpack.c.l.b16 %v400
        %v693 = vunpack.c.h.b16 %v400
        %v694 = vunpack.c.l.b16 %v401
        %v695 = vunpack.c.h.b16 %v401
        %v696 = vunpack.c.l.b16 %v402
        %v697 = vunpack.c.h.b16 %v402
        %v698 = vunpack.c.l.b16 %v403
        %v699 = vunpack.c.h.b16 %v403
        %v700 = vunpack.c.l.b16 %v404
        %v701 = vunpack.c.h.b16 %v404
        %v702 = vunpack.c.l.b16 %v405
        %v703 = vunpack.c.h.b16 %v405
        %v704 = vunpack.c.l.b16 %v406
        %v705 = vunpack.c.h.b16 %v406
        %v706 = vunpack.c.l.b16 %v407
        %v707 = vunpack.c.h.b16 %v407
        %v708 = vunpack.c.l.b16 %v408
        %v709 = vunpack.c.h.b16 %v408
        %v710 = vunpack.c.l.b16 %v409
        %v711 = vunpack.c.h.b16 %v409
        %v712 = vunpack.c.l.b16 %v410
        %v713 = vunpack.c.h.b16 %v410
        %v714 = vunpack.c.l.b16 %v411
        %v715 = vunpack.c.h.b16 %v411
        %v716 = vunpack.c.l.b16 %v412
        %v717 = vunpack.c.h.b16 %v412
        %v718 = vunpack.c.l.b16 %v413
        %v719 = vunpack.c.h.b16 %v413
        %v720 = vunpack.c.l.b16 %v414
        %v721 = vunpack.c.h.b16 %v414
        %v722 = vunpack.c.l.b16 %v415
        %v723 = vunpack.c.h.b16 %v415
        %v724 = vunpack.c.l.b16 %v416
        %v725 = vunpack.c.h.b16 %v416
        %v726 = vunpack.c.l.b16 %v417
        %v727 = vunpack.c.h.b16 %v417
        %v728 = vunpack.c.l.b16 %v418
        %v729 = vunpack.c.h.b16 %v418
        %v730 = vunpack.c.l.b16 %v419
        %v731 = vunpack.c.h.b16 %v419
        %v732 = vpack.c.b16 %v546, %v540
        %v733 = vpack.c.b16 %v547, %v541
        %v734 = vpack.c.b16 %v548, %v542
        %v735 = vpack.c.b16 %v549, %v543
        %v736 = vpack.c.b16 %v550, %v544
        %v737 = vpack.c.b16 %v551, %v545
        %v738 = vpack.c.b16 %v558, %v552
        %v739 = vpack.c.b16 %v559, %v553
        %v740 = vpack.c.b16 %v560, %v554
        %v741 = vpack.c.b16 %v561, %v555
        %v742 = vpack.c.b16 %v562, %v556
        %v743 = vpack.c.b16 %v563, %v557
        %v744 = vpack.c.b16 %v570, %v564
        %v745 = vpack.c.b16 %v571, %v565
        %v746 = vpack.c.b16 %v572, %v566
        %v747 = vpack.c.b16 %v573, %v567
        %v748 = vpack.c.b16 %v574, %v568
        %v749 = vpack.c.b16 %v575, %v569
        %v750 = vpack.c.b16 %v582, %v576
        %v751 = vpack.c.b16 %v583, %v577
        %v752 = vpack.c.b16 %v584, %v578
        %v753 = vpack.c.b16 %v585, %v579
        %v754 = vpack.c.b16 %v586, %v580
        %v755 = vpack.c.b16 %v587, %v581
        %v756 = vpack.c.b16 %v594, %v588
        %v757 = vpack.c.b16 %v595, %v589
        %v758 = vpack.c.b16 %v596, %v590
        %v759 = vpack.c.b16 %v597, %v591
        %v760 = vpack.c.b16 %v598, %v592
        %v761 = vpack.c.b16 %v599, %v593
        %v762 = vpack.c.b16 %v606, %v600
        %v763 = vpack.c.b16 %v607, %v601
        %v764 = vpack.c.b16 %v608, %v602
        %v765 = vpack.c.b16 %v609, %v603
        %v766 = vpack.c.b16 %v610, %v604
        %v767 = vpack.c.b16 %v611, %v605
        %v768 = vpack.c.b16 %v618, %v612
        %v769 = vpack.c.b16 %v619, %v613
        %v770 = vpack.c.b16 %v620, %v614
        %v771 = vpack.c.b16 %v621, %v615
        %v772 = vpack.c.b16 %v622, %v616
        %v773 = vpack.c.b16 %v623, %v617
        %v774 = vpack.c.b16 %v630, %v624
        %v775 = vpack.c.b16 %v631, %v625
        %v776 = vpack.c.b16 %v632, %v626
        %v777 = vpack.c.b16 %v633, %v627
        %v778 = vpack.c.b16 %v634, %v628
        %v779 = vpack.c.b16 %v635, %v629
        %v780 = vpack.c.b16 %v642, %v636
        %v781 = vpack.c.b16 %v643, %v637
        %v782 = vpack.c.b16 %v644, %v638
        %v783 = vpack.c.b16 %v645, %v639
        %v784 = vpack.c.b16 %v646, %v640
        %v785 = vpack.c.b16 %v647, %v641
        %v786 = vpack.c.b16 %v654, %v648
        %v787 = vpack.c.b16 %v655, %v649
        %v788 = vpack.c.b16 %v656, %v650
        %v789 = vpack.c.b16 %v657, %v651
        %v790 = vpack.c.b16 %v658, %v652
        %v791 = vpack.c.b16 %v659, %v653
        %v792 = vpack.c.b16 %v666, %v660
        %v793 = vpack.c.b16 %v667, %v661
        %v794 = vpack.c.b16 %v668, %v662
        %v795 = vpack.c.b16 %v669, %v663
        %v796 = vpack.c.b16 %v670, %v664
        %v797 = vpack.c.b16 %v671, %v665
        %v798 = vpack.c.b16 %v678, %v672
        %v799 = vpack.c.b16 %v679, %v673
        %v800 = vpack.c.b16 %v680, %v674
        %v801 = vpack.c.b16 %v681, %v675
        %v802 = vpack.c.b16 %v682, %v676
        %v803 = vpack.c.b16 %v683, %v677
        %v804 = vpack.c.b16 %v690, %v684
        %v805 = vpack.c.b16 %v691, %v685
        %v806 = vpack.c.b16 %v692, %v686
        %v807 = vpack.c.b16 %v693, %v687
        %v808 = vpack.c.b16 %v694, %v688
        %v809 = vpack.c.b16 %v695, %v689
        %v810 = vpack.c.b16 %v702, %v696
        %v811 = vpack.c.b16 %v703, %v697
        %v812 = vpack.c.b16 %v704, %v698
        %v813 = vpack.c.b16 %v705, %v699
        %v814 = vpack.c.b16 %v706, %v700
        %v815 = vpack.c.b16 %v707, %v701
        %v816 = vpack.c.b16 %v714, %v708
        %v817 = vpack.c.b16 %v715, %v709
        %v818 = vpack.c.b16 %v716, %v710
        %v819 = vpack.c.b16 %v717, %v711
        %v820 = vpack.c.b16 %v718, %v712
        %v821 = vpack.c.b16 %v719, %v713
        %v822 = vpack.c.b16 %v726, %v720
        %v823 = vpack.c.b16 %v727, %v721
        %v824 = vpack.c.b16 %v728, %v722
        %v825 = vpack.c.b16 %v729, %v723
        %v826 = vpack.c.b16 %v730, %v724
        %v827 = vpack.c.b16 %v731, %v725
        %924 = vmatprep.subr.bf16.mxu0 %v775
        %925 = vmatpush1.bf16.msra.mxu0 %v774
        %926 = vmatprep.subr.bf16.mxu0 %v769
        %927 = vmatpush1.bf16.msra.mxu0 %v768
        %928 = vmatprep.subr.bf16.mxu0 %v763
        %929 = vmatpush1.bf16.msra.mxu0 %v762
        %930 = vmatprep.subr.bf16.mxu0 %v757
        %931 = vmatpush1.bf16.msra.mxu0 %v756
        %932 = vmatprep.subr.bf16.mxu0 %v751
        %933 = vmatpush1.bf16.msra.mxu0 %v750
        %934 = vmatprep.subr.bf16.mxu0 %v745
        %935 = vmatpush1.bf16.msra.mxu0 %v744
        %936 = vmatprep.subr.bf16.mxu0 %v739
        %937 = vmatpush1.bf16.msra.mxu0 %v738
        %938 = vmatprep.subr.bf16.mxu0 %v733
        %939 = vmatpush1.bf16.msra.mxu0 %v732
        %940 = vmatprep.subr.bf16.mxu0 %v823
        %941 = vmatpush2.bf16.msra.mxu0 %v822
        %942 = vmatprep.subr.bf16.mxu0 %v817
        %943 = vmatpush2.bf16.msra.mxu0 %v816
        %944 = vmatprep.subr.bf16.mxu0 %v811
        %945 = vmatpush2.bf16.msra.mxu0 %v810
        %946 = vmatprep.subr.bf16.mxu0 %v805
        %947 = vmatpush2.bf16.msra.mxu0 %v804
        %948 = vmatprep.subr.bf16.mxu0 %v799
        %949 = vmatpush2.bf16.msra.mxu0 %v798
        %950 = vmatprep.subr.bf16.mxu0 %v793
        %951 = vmatpush2.bf16.msra.mxu0 %v792
        %952 = vmatprep.subr.bf16.mxu0 %v787
        %953 = vmatpush2.bf16.msra.mxu0 %v786
        %954 = vmatprep.subr.bf16.mxu0 %v781
        %955 = vmatpush2.bf16.msra.mxu0 %v780
        %956 = vmatprep.mubr.bf16.mxu0 %v323
        %957 = vmatmul.mubr.bf16.gmra.mxu0 %v322
        %v958 = vpop.f32.mrf.mxu0
        %v959 = vadd.f32 %v423, %v958
        %v960 = vpop.f32.mrf.mxu0
        %v961 = vadd.f32 %v427, %v960
        %v962 = vpop.f32.mrf.mxu0
        %v963 = vpop.f32.mrf.mxu0
        %964 = vdwg.mxu0
        %965 = vmatprep.subr.bf16.mxu0 %v777
        %966 = vmatpush1.bf16.msra.mxu0 %v776
        %967 = vmatprep.subr.bf16.mxu0 %v771
        %968 = vmatpush1.bf16.msra.mxu0 %v770
        %969 = vmatprep.subr.bf16.mxu0 %v765
        %970 = vmatpush1.bf16.msra.mxu0 %v764
        %971 = vmatprep.subr.bf16.mxu0 %v759
        %972 = vmatpush1.bf16.msra.mxu0 %v758
        %973 = vmatprep.subr.bf16.mxu0 %v753
        %974 = vmatpush1.bf16.msra.mxu0 %v752
        %975 = vmatprep.subr.bf16.mxu0 %v747
        %976 = vmatpush1.bf16.msra.mxu0 %v746
        %977 = vmatprep.subr.bf16.mxu0 %v741
        %978 = vmatpush1.bf16.msra.mxu0 %v740
        %979 = vmatprep.subr.bf16.mxu0 %v735
        %980 = vmatpush1.bf16.msra.mxu0 %v734
        %981 = vmatprep.subr.bf16.mxu0 %v825
        %982 = vmatpush2.bf16.msra.mxu0 %v824
        %983 = vmatprep.subr.bf16.mxu0 %v819
        %984 = vmatpush2.bf16.msra.mxu0 %v818
        %985 = vmatprep.subr.bf16.mxu0 %v813
        %986 = vmatpush2.bf16.msra.mxu0 %v812
        %987 = vmatprep.subr.bf16.mxu0 %v807
        %988 = vmatpush2.bf16.msra.mxu0 %v806
        %989 = vmatprep.subr.bf16.mxu0 %v801
        %990 = vmatpush2.bf16.msra.mxu0 %v800
        %991 = vmatprep.subr.bf16.mxu0 %v795
        %992 = vmatpush2.bf16.msra.mxu0 %v794
        %993 = vmatprep.subr.bf16.mxu0 %v789
        %994 = vmatpush2.bf16.msra.mxu0 %v788
        %995 = vmatprep.subr.bf16.mxu0 %v783
        %996 = vmatpush2.bf16.msra.mxu0 %v782
        %997 = vmatprep.mubr.bf16.mxu0 %v323
        %998 = vmatmul.mubr.bf16.gmra.mxu0 %v322
        %v999 = vpop.f32.mrf.mxu0
        %v1000 = vadd.f32 %v431, %v999
        %v1001 = vpop.f32.mrf.mxu0
        %v1002 = vadd.f32 %v435, %v1001
        %v1003 = vpop.f32.mrf.mxu0
        %v1004 = vpop.f32.mrf.mxu0
        %1005 = vdwg.mxu0
        %1006 = vmatprep.subr.bf16.mxu0 %v779
        %1007 = vmatpush1.bf16.msra.mxu0 %v778
        %1008 = vmatprep.subr.bf16.mxu0 %v773
        %1009 = vmatpush1.bf16.msra.mxu0 %v772
        %1010 = vmatprep.subr.bf16.mxu0 %v767
        %1011 = vmatpush1.bf16.msra.mxu0 %v766
        %1012 = vmatprep.subr.bf16.mxu0 %v761
        %1013 = vmatpush1.bf16.msra.mxu0 %v760
        %1014 = vmatprep.subr.bf16.mxu0 %v755
        %1015 = vmatpush1.bf16.msra.mxu0 %v754
        %1016 = vmatprep.subr.bf16.mxu0 %v749
        %1017 = vmatpush1.bf16.msra.mxu0 %v748
        %1018 = vmatprep.subr.bf16.mxu0 %v743
        %1019 = vmatpush1.bf16.msra.mxu0 %v742
        %1020 = vmatprep.subr.bf16.mxu0 %v737
        %1021 = vmatpush1.bf16.msra.mxu0 %v736
        %1022 = vmatprep.subr.bf16.mxu0 %v827
        %1023 = vmatpush2.bf16.msra.mxu0 %v826
        %1024 = vmatprep.subr.bf16.mxu0 %v821
        %1025 = vmatpush2.bf16.msra.mxu0 %v820
        %1026 = vmatprep.subr.bf16.mxu0 %v815
        %1027 = vmatpush2.bf16.msra.mxu0 %v814
        %1028 = vmatprep.subr.bf16.mxu0 %v809
        %1029 = vmatpush2.bf16.msra.mxu0 %v808
        %1030 = vmatprep.subr.bf16.mxu0 %v803
        %1031 = vmatpush2.bf16.msra.mxu0 %v802
        %1032 = vmatprep.subr.bf16.mxu0 %v797
        %1033 = vmatpush2.bf16.msra.mxu0 %v796
        %1034 = vmatprep.subr.bf16.mxu0 %v791
        %1035 = vmatpush2.bf16.msra.mxu0 %v790
        %1036 = vmatprep.subr.bf16.mxu0 %v785
        %1037 = vmatpush2.bf16.msra.mxu0 %v784
        %1038 = vmatprep.mubr.bf16.mxu0 %v323
        %1039 = vmatmul.mubr.bf16.gmra.mxu0 %v322
        %v1040 = vpop.f32.mrf.mxu0
        %v1041 = vadd.f32 %v439, %v1040
        %v1042 = vpop.f32.mrf.mxu0
        %v1043 = vadd.f32 %v443, %v1042
        %v1044 = vpop.f32.mrf.mxu0
        %v1045 = vpop.f32.mrf.mxu0
        %1046 = vdwg.mxu0
        %v1047 = vsub.f32 %v278, 1.0
        %v1048 = vmul.f32 %v1047, 1e+09
        %v1049 = vpack.c.bf16 %v959, %v959
        %v1050 = vpack.c.bf16 %v1000, %v1000
        %v1051 = vpack.c.bf16 %v1041, %v1041
        %1052 = vmatprep.subr.bf16.mxu0 0
        %1053 = vmatpush1.bf16.xpose.msra.mxu0 0
        %1054 = vmatprep.subr.bf16.mxu0 0
        %1055 = vmatpush1.bf16.xpose.msra.mxu0 0
        %1056 = vmatprep.subr.bf16.mxu0 0
        %1057 = vmatpush1.bf16.xpose.msra.mxu0 0
        %1058 = vmatprep.subr.bf16.mxu0 0
        %1059 = vmatpush1.bf16.xpose.msra.mxu0 0
        %1060 = vmatprep.subr.bf16.mxu0 0
        %1061 = vmatpush1.bf16.xpose.msra.mxu0 0
        %1062 = vmatprep.subr.bf16.mxu0 0
        %1063 = vmatpush1.bf16.xpose.msra.mxu0 0
        %1064 = vmatprep.subr.bf16.mxu0 0
        %1065 = vmatpush1.bf16.xpose.msra.mxu0 0
        %1066 = vmatprep.subr.bf16.mxu0 0
        %1067 = vmatpush1.bf16.xpose.msra.mxu0 %v1050
        %1068 = vmatprep.subr.bf16.mxu0 0
        %1069 = vmatpush2.bf16.xpose.msra.mxu0 0
        %1070 = vmatprep.subr.bf16.mxu0 0
        %1071 = vmatpush2.bf16.xpose.msra.mxu0 0
        %1072 = vmatprep.subr.bf16.mxu0 0
        %1073 = vmatpush2.bf16.xpose.msra.mxu0 0
        %1074 = vmatprep.subr.bf16.mxu0 0
        %1075 = vmatpush2.bf16.xpose.msra.mxu0 0
        %1076 = vmatprep.subr.bf16.mxu0 0
        %1077 = vmatpush2.bf16.xpose.msra.mxu0 0
        %1078 = vmatprep.subr.bf16.mxu0 0
        %1079 = vmatpush2.bf16.xpose.msra.mxu0 0
        %1080 = vmatprep.subr.bf16.mxu0 0
        %1081 = vmatpush2.bf16.xpose.msra.mxu0 0
        %1082 = vmatprep.subr.bf16.mxu0 0
        %1083 = vmatpush2.bf16.xpose.msra.mxu0 0
        %1084 = vmatprep.mubr.bf16.mxu0 0
        %1085 = vmatmul.mubr.bf16.gmra.mxu0 %v1049
        %v1086 = vpop.f32.mrf.mxu0
        %v1087 = vadd.f32 0.0, %v1086
        %v1088 = vpop.f32.mrf.mxu0
        %v1089 = vpop.f32.mrf.mxu0
        %v1090 = vpop.f32.mrf.mxu0
        %1091 = vdwg.mxu0
        %v1092 = vmul.f32 %v1087, 0.088388346
        %v1094 = vlaneseq
        %v1095 = vshrl.u32 %v1094, 7
        %v1096 = vsub.s32 0, %v1095
        %v1097 = vrot.slane %v1048, %v1096
        %v1099 = vadd.f32 %v1092, %v1097
        %vm1100 = vcmask 64512
        %v1101 = vsel %vm1100, %v1099, -inf
        %1102 = vmax.xlane.f32.xlu0 %v1101
        %v1103 = vpop.xlane.xlu0 %1102
        %v1104 = vsub.f32 %v1099, %v1103
        %v1105 = vmul.f32 %v1104, 1.442695
        %v1106 = vpow.pop %v1105
        %v1107 = vsel %vm1100, %v1106, 0.0
        %1108 = vadd.xlane.f32.xlu0 %v1107
        %v1109 = vpop.xlane.xlu0 %1108
        %v1110 = vrcp.pop %v1109
        %v1111 = vmul.f32 %v1106, %v1110
        %v1112 = vpack.c.bf16 %v1111, %v1111
        %v1114 = vsel %vm1100, %v1112, 0
        %vm1116 = vcmask 1043456
        %v1118 = vsel %vm1116, %v1051, 0
        %1120 = vmatprep.subr.bf16.mxu0 0
        %1121 = vmatpush1.bf16.msra.mxu0 0
        %1122 = vmatprep.subr.bf16.mxu0 0
        %1123 = vmatpush1.bf16.msra.mxu0 0
        %1124 = vmatprep.subr.bf16.mxu0 0
        %1125 = vmatpush1.bf16.msra.mxu0 0
        %1126 = vmatprep.subr.bf16.mxu0 0
        %1127 = vmatpush1.bf16.msra.mxu0 0
        %1128 = vmatprep.subr.bf16.mxu0 0
        %1129 = vmatpush1.bf16.msra.mxu0 0
        %1130 = vmatprep.subr.bf16.mxu0 0
        %1131 = vmatpush1.bf16.msra.mxu0 0
        %1132 = vmatprep.subr.bf16.mxu0 0
        %1133 = vmatpush1.bf16.msra.mxu0 0
        %1134 = vmatprep.subr.bf16.mxu0 0
        %1135 = vmatpush1.bf16.msra.mxu0 %v1118
        %1136 = vmatprep.subr.bf16.mxu0 0
        %1137 = vmatpush2.bf16.msra.mxu0 0
        %1138 = vmatprep.subr.bf16.mxu0 0
        %1139 = vmatpush2.bf16.msra.mxu0 0
        %1140 = vmatprep.subr.bf16.mxu0 0
        %1141 = vmatpush2.bf16.msra.mxu0 0
        %1142 = vmatprep.subr.bf16.mxu0 0
        %1143 = vmatpush2.bf16.msra.mxu0 0
        %1144 = vmatprep.subr.bf16.mxu0 0
        %1145 = vmatpush2.bf16.msra.mxu0 0
        %1146 = vmatprep.subr.bf16.mxu0 0
        %1147 = vmatpush2.bf16.msra.mxu0 0
        %1148 = vmatprep.subr.bf16.mxu0 0
        %1149 = vmatpush2.bf16.msra.mxu0 0
        %1150 = vmatprep.subr.bf16.mxu0 0
        %1151 = vmatpush2.bf16.msra.mxu0 0
        %1152 = vmatprep.mubr.bf16.mxu0 0
        %1153 = vmatmul.mubr.bf16.gmra.mxu0 %v1114
        %v1154 = vpop.f32.mrf.mxu0
        %v1155 = vadd.f32 0.0, %v1154
        %v1156 = vpop.f32.mrf.mxu0
        %v1157 = vpop.f32.mrf.mxu0
        %v1158 = vpop.f32.mrf.mxu0
        %1159 = vdwg.mxu0
        %v1160 = vpack.c.bf16 %v961, %v961
        %v1161 = vpack.c.bf16 %v1002, %v1002
        %v1162 = vpack.c.bf16 %v1043, %v1043
        %1163 = vmatprep.subr.bf16.mxu0 0
        %1164 = vmatpush1.bf16.xpose.msra.mxu0 0
        %1165 = vmatprep.subr.bf16.mxu0 0
        %1166 = vmatpush1.bf16.xpose.msra.mxu0 0
        %1167 = vmatprep.subr.bf16.mxu0 0
        %1168 = vmatpush1.bf16.xpose.msra.mxu0 0
        %1169 = vmatprep.subr.bf16.mxu0 0
        %1170 = vmatpush1.bf16.xpose.msra.mxu0 0
        %1171 = vmatprep.subr.bf16.mxu0 0
        %1172 = vmatpush1.bf16.xpose.msra.mxu0 0
        %1173 = vmatprep.subr.bf16.mxu0 0
        %1174 = vmatpush1.bf16.xpose.msra.mxu0 0
        %1175 = vmatprep.subr.bf16.mxu0 0
        %1176 = vmatpush1.bf16.xpose.msra.mxu0 0
        %1177 = vmatprep.subr.bf16.mxu0 0
        %1178 = vmatpush1.bf16.xpose.msra.mxu0 %v1161
        %1179 = vmatprep.subr.bf16.mxu0 0
        %1180 = vmatpush2.bf16.xpose.msra.mxu0 0
        %1181 = vmatprep.subr.bf16.mxu0 0
        %1182 = vmatpush2.bf16.xpose.msra.mxu0 0
        %1183 = vmatprep.subr.bf16.mxu0 0
        %1184 = vmatpush2.bf16.xpose.msra.mxu0 0
        %1185 = vmatprep.subr.bf16.mxu0 0
        %1186 = vmatpush2.bf16.xpose.msra.mxu0 0
        %1187 = vmatprep.subr.bf16.mxu0 0
        %1188 = vmatpush2.bf16.xpose.msra.mxu0 0
        %1189 = vmatprep.subr.bf16.mxu0 0
        %1190 = vmatpush2.bf16.xpose.msra.mxu0 0
        %1191 = vmatprep.subr.bf16.mxu0 0
        %1192 = vmatpush2.bf16.xpose.msra.mxu0 0
        %1193 = vmatprep.subr.bf16.mxu0 0
        %1194 = vmatpush2.bf16.xpose.msra.mxu0 0
        %1195 = vmatprep.mubr.bf16.mxu0 0
        %1196 = vmatmul.mubr.bf16.gmra.mxu0 %v1160
        %v1197 = vpop.f32.mrf.mxu0
        %v1198 = vadd.f32 0.0, %v1197
        %v1199 = vpop.f32.mrf.mxu0
        %v1200 = vpop.f32.mrf.mxu0
        %v1201 = vpop.f32.mrf.mxu0
        %1202 = vdwg.mxu0
        %v1203 = vmul.f32 %v1198, 0.088388346
        %v1204 = vadd.f32 %v1203, %v1097
        %v1205 = vsel %vm1100, %v1204, -inf
        %1206 = vmax.xlane.f32.xlu0 %v1205
        %v1207 = vpop.xlane.xlu0 %1206
        %v1208 = vsub.f32 %v1204, %v1207
        %v1209 = vmul.f32 %v1208, 1.442695
        %v1210 = vpow.pop %v1209
        %v1211 = vsel %vm1100, %v1210, 0.0
        %1212 = vadd.xlane.f32.xlu0 %v1211
        %v1213 = vpop.xlane.xlu0 %1212
        %v1214 = vrcp.pop %v1213
        %v1215 = vmul.f32 %v1210, %v1214
        %v1216 = vpack.c.bf16 %v1215, %v1215
        %v1218 = vsel %vm1100, %v1216, 0
        %v1221 = vsel %vm1116, %v1162, 0
        %1223 = vmatprep.subr.bf16.mxu0 0
        %1224 = vmatpush1.bf16.msra.mxu0 0
        %1225 = vmatprep.subr.bf16.mxu0 0
        %1226 = vmatpush1.bf16.msra.mxu0 0
        %1227 = vmatprep.subr.bf16.mxu0 0
        %1228 = vmatpush1.bf16.msra.mxu0 0
        %1229 = vmatprep.subr.bf16.mxu0 0
        %1230 = vmatpush1.bf16.msra.mxu0 0
        %1231 = vmatprep.subr.bf16.mxu0 0
        %1232 = vmatpush1.bf16.msra.mxu0 0
        %1233 = vmatprep.subr.bf16.mxu0 0
        %1234 = vmatpush1.bf16.msra.mxu0 0
        %1235 = vmatprep.subr.bf16.mxu0 0
        %1236 = vmatpush1.bf16.msra.mxu0 0
        %1237 = vmatprep.subr.bf16.mxu0 0
        %1238 = vmatpush1.bf16.msra.mxu0 %v1221
        %1239 = vmatprep.subr.bf16.mxu0 0
        %1240 = vmatpush2.bf16.msra.mxu0 0
        %1241 = vmatprep.subr.bf16.mxu0 0
        %1242 = vmatpush2.bf16.msra.mxu0 0
        %1243 = vmatprep.subr.bf16.mxu0 0
        %1244 = vmatpush2.bf16.msra.mxu0 0
        %1245 = vmatprep.subr.bf16.mxu0 0
        %1246 = vmatpush2.bf16.msra.mxu0 0
        %1247 = vmatprep.subr.bf16.mxu0 0
        %1248 = vmatpush2.bf16.msra.mxu0 0
        %1249 = vmatprep.subr.bf16.mxu0 0
        %1250 = vmatpush2.bf16.msra.mxu0 0
        %1251 = vmatprep.subr.bf16.mxu0 0
        %1252 = vmatpush2.bf16.msra.mxu0 0
        %1253 = vmatprep.subr.bf16.mxu0 0
        %1254 = vmatpush2.bf16.msra.mxu0 0
        %1255 = vmatprep.mubr.bf16.mxu0 0
        %1256 = vmatmul.mubr.bf16.gmra.mxu0 %v1218
        %v1257 = vpop.f32.mrf.mxu0
        %v1258 = vadd.f32 0.0, %v1257
        %v1259 = vpop.f32.mrf.mxu0
        %v1260 = vpop.f32.mrf.mxu0
        %v1261 = vpop.f32.mrf.mxu0
        %1262 = vdwg.mxu0
        %v1263 = vpack.c.bf16 %v1155, %v1155
        %v1264 = vpack.c.bf16 %v1258, %v1258
        %v1265 = vld [vmem:[#allocation7 + $0x18] sm:$0xff]
        %v1266 = vld [vmem:[#allocation7 + $0x64] sm:$0xff]
        %v1267 = vld [vmem:[#allocation7 + $0xb0] sm:$0xff]
        %v1268 = vld [vmem:[#allocation7 + $0xfc] sm:$0xff]
        %v1269 = vld [vmem:[#allocation7 + $0x148] sm:$0xff]
        %v1270 = vld [vmem:[#allocation7 + $0x194] sm:$0xff]
        %v1271 = vld [vmem:[#allocation7 + $0x1e0] sm:$0xff]
        %v1272 = vld [vmem:[#allocation7 + $0x22c] sm:$0xff]
        %v1273 = vld [vmem:[#allocation7 + $0x278] sm:$0xff]
        %v1274 = vld [vmem:[#allocation7 + $0x2c4] sm:$0xff]
        %v1275 = vld [vmem:[#allocation7 + $0x310] sm:$0xff]
        %v1276 = vld [vmem:[#allocation7 + $0x35c] sm:$0xff]
        %v1277 = vld [vmem:[#allocation7 + $0x3a8] sm:$0xff]
        %v1278 = vld [vmem:[#allocation7 + $0x3f4] sm:$0xff]
        %v1279 = vld [vmem:[#allocation7 + $0x440] sm:$0xff]
        %v1280 = vld [vmem:[#allocation7 + $0x48c] sm:$0xff]
        %v1281 = vld [vmem:[#allocation7 + $0x4d8] sm:$0xff]
        %v1282 = vld [vmem:[#allocation7 + $0x524] sm:$0xff]
        %v1283 = vld [vmem:[#allocation7 + $0x570] sm:$0xff]
        %v1284 = vld [vmem:[#allocation7 + $0x5bc] sm:$0xff]
        %v1285 = vld [vmem:[#allocation7 + $0x608] sm:$0xff]
        %v1286 = vld [vmem:[#allocation7 + $0x654] sm:$0xff]
        %v1287 = vld [vmem:[#allocation7 + $0x6a0] sm:$0xff]
        %v1288 = vld [vmem:[#allocation7 + $0x6ec] sm:$0xff]
        %v1289 = vld [vmem:[#allocation7 + $0x738] sm:$0xff]
        %v1290 = vld [vmem:[#allocation7 + $0x784] sm:$0xff]
        %v1291 = vld [vmem:[#allocation7 + $0x7d0] sm:$0xff]
        %v1292 = vld [vmem:[#allocation7 + $0x81c] sm:$0xff]
        %v1293 = vld [vmem:[#allocation7 + $0x868] sm:$0xff]
        %v1294 = vld [vmem:[#allocation7 + $0x8b4] sm:$0xff]
        %v1295 = vld [vmem:[#allocation7 + $0x900] sm:$0xff]
        %v1296 = vld [vmem:[#allocation7 + $0x94c] sm:$0xff]
        %v1297 = vlaneseq
        %v1298 = vshrl.u32 %v1297, 7
        %v1299 = vsub.s32 1, %v1298
        %v1300 = vrot.slane %v279, %v1299
        %v1301 = vlaneseq
        %v1302 = vshrl.u32 %v1301, 7
        %v1303 = vsub.s32 1, %v1302
        %v1304 = vrot.slane %v280, %v1303
        %v1337 = vunpack.c.l.b16 %v1265
        %v1338 = vunpack.c.h.b16 %v1265
        %v1339 = vunpack.c.l.b16 %v1266
        %v1340 = vunpack.c.h.b16 %v1266
        %v1341 = vunpack.c.l.b16 %v1267
        %v1342 = vunpack.c.h.b16 %v1267
        %v1343 = vunpack.c.l.b16 %v1268
        %v1344 = vunpack.c.h.b16 %v1268
        %v1345 = vunpack.c.l.b16 %v1269
        %v1346 = vunpack.c.h.b16 %v1269
        %v1347 = vunpack.c.l.b16 %v1270
        %v1348 = vunpack.c.h.b16 %v1270
        %v1349 = vunpack.c.l.b16 %v1271
        %v1350 = vunpack.c.h.b16 %v1271
        %v1351 = vunpack.c.l.b16 %v1272
        %v1352 = vunpack.c.h.b16 %v1272
        %v1353 = vunpack.c.l.b16 %v1273
        %v1354 = vunpack.c.h.b16 %v1273
        %v1355 = vunpack.c.l.b16 %v1274
        %v1356 = vunpack.c.h.b16 %v1274
        %v1357 = vunpack.c.l.b16 %v1275
        %v1358 = vunpack.c.h.b16 %v1275
        %v1359 = vunpack.c.l.b16 %v1276
        %v1360 = vunpack.c.h.b16 %v1276
        %v1361 = vunpack.c.l.b16 %v1277
        %v1362 = vunpack.c.h.b16 %v1277
        %v1363 = vunpack.c.l.b16 %v1278
        %v1364 = vunpack.c.h.b16 %v1278
        %v1365 = vunpack.c.l.b16 %v1279
        %v1366 = vunpack.c.h.b16 %v1279
        %v1367 = vunpack.c.l.b16 %v1280
        %v1368 = vunpack.c.h.b16 %v1280
        %v1369 = vunpack.c.l.b16 %v1281
        %v1370 = vunpack.c.h.b16 %v1281
        %v1371 = vunpack.c.l.b16 %v1282
        %v1372 = vunpack.c.h.b16 %v1282
        %v1373 = vunpack.c.l.b16 %v1283
        %v1374 = vunpack.c.h.b16 %v1283
        %v1375 = vunpack.c.l.b16 %v1284
        %v1376 = vunpack.c.h.b16 %v1284
        %v1377 = vunpack.c.l.b16 %v1285
        %v1378 = vunpack.c.h.b16 %v1285
        %v1379 = vunpack.c.l.b16 %v1286
        %v1380 = vunpack.c.h.b16 %v1286
        %v1381 = vunpack.c.l.b16 %v1287
        %v1382 = vunpack.c.h.b16 %v1287
        %v1383 = vunpack.c.l.b16 %v1288
        %v1384 = vunpack.c.h.b16 %v1288
        %v1385 = vunpack.c.l.b16 %v1289
        %v1386 = vunpack.c.h.b16 %v1289
        %v1387 = vunpack.c.l.b16 %v1290
        %v1388 = vunpack.c.h.b16 %v1290
        %v1389 = vunpack.c.l.b16 %v1291
        %v1390 = vunpack.c.h.b16 %v1291
        %v1391 = vunpack.c.l.b16 %v1292
        %v1392 = vunpack.c.h.b16 %v1292
        %v1393 = vunpack.c.l.b16 %v1293
        %v1394 = vunpack.c.h.b16 %v1293
        %v1395 = vunpack.c.l.b16 %v1294
        %v1396 = vunpack.c.h.b16 %v1294
        %v1397 = vunpack.c.l.b16 %v1295
        %v1398 = vunpack.c.h.b16 %v1295
        %v1399 = vunpack.c.l.b16 %v1296
        %v1400 = vunpack.c.h.b16 %v1296
        %v1401 = vpack.c.b16 %v1339, %v1337
        %v1402 = vpack.c.b16 %v1340, %v1338
        %v1403 = vpack.c.b16 %v1343, %v1341
        %v1404 = vpack.c.b16 %v1344, %v1342
        %v1405 = vpack.c.b16 %v1347, %v1345
        %v1406 = vpack.c.b16 %v1348, %v1346
        %v1407 = vpack.c.b16 %v1351, %v1349
        %v1408 = vpack.c.b16 %v1352, %v1350
        %v1409 = vpack.c.b16 %v1355, %v1353
        %v1410 = vpack.c.b16 %v1356, %v1354
        %v1411 = vpack.c.b16 %v1359, %v1357
        %v1412 = vpack.c.b16 %v1360, %v1358
        %v1413 = vpack.c.b16 %v1363, %v1361
        %v1414 = vpack.c.b16 %v1364, %v1362
        %v1415 = vpack.c.b16 %v1367, %v1365
        %v1416 = vpack.c.b16 %v1368, %v1366
        %v1417 = vpack.c.b16 %v1371, %v1369
        %v1418 = vpack.c.b16 %v1372, %v1370
        %v1419 = vpack.c.b16 %v1375, %v1373
        %v1420 = vpack.c.b16 %v1376, %v1374
        %v1421 = vpack.c.b16 %v1379, %v1377
        %v1422 = vpack.c.b16 %v1380, %v1378
        %v1423 = vpack.c.b16 %v1383, %v1381
        %v1424 = vpack.c.b16 %v1384, %v1382
        %v1425 = vpack.c.b16 %v1387, %v1385
        %v1426 = vpack.c.b16 %v1388, %v1386
        %v1427 = vpack.c.b16 %v1391, %v1389
        %v1428 = vpack.c.b16 %v1392, %v1390
        %v1429 = vpack.c.b16 %v1395, %v1393
        %v1430 = vpack.c.b16 %v1396, %v1394
        %v1431 = vpack.c.b16 %v1399, %v1397
        %v1432 = vpack.c.b16 %v1400, %v1398
        %1465 = vmatprep.subr.bf16.mxu0 %v1416
        %1466 = vmatpush1.bf16.msra.mxu0 %v1415
        %1467 = vmatprep.subr.bf16.mxu0 %v1414
        %1468 = vmatpush1.bf16.msra.mxu0 %v1413
        %1469 = vmatprep.subr.bf16.mxu0 %v1412
        %1470 = vmatpush1.bf16.msra.mxu0 %v1411
        %1471 = vmatprep.subr.bf16.mxu0 %v1410
        %1472 = vmatpush1.bf16.msra.mxu0 %v1409
        %1473 = vmatprep.subr.bf16.mxu0 %v1408
        %1474 = vmatpush1.bf16.msra.mxu0 %v1407
        %1475 = vmatprep.subr.bf16.mxu0 %v1406
        %1476 = vmatpush1.bf16.msra.mxu0 %v1405
        %1477 = vmatprep.subr.bf16.mxu0 %v1404
        %1478 = vmatpush1.bf16.msra.mxu0 %v1403
        %1479 = vmatprep.subr.bf16.mxu0 %v1402
        %1480 = vmatpush1.bf16.msra.mxu0 %v1401
        %1481 = vmatprep.subr.bf16.mxu0 %v1432
        %1482 = vmatpush2.bf16.msra.mxu0 %v1431
        %1483 = vmatprep.subr.bf16.mxu0 %v1430
        %1484 = vmatpush2.bf16.msra.mxu0 %v1429
        %1485 = vmatprep.subr.bf16.mxu0 %v1428
        %1486 = vmatpush2.bf16.msra.mxu0 %v1427
        %1487 = vmatprep.subr.bf16.mxu0 %v1426
        %1488 = vmatpush2.bf16.msra.mxu0 %v1425
        %1489 = vmatprep.subr.bf16.mxu0 %v1424
        %1490 = vmatpush2.bf16.msra.mxu0 %v1423
        %1491 = vmatprep.subr.bf16.mxu0 %v1422
        %1492 = vmatpush2.bf16.msra.mxu0 %v1421
        %1493 = vmatprep.subr.bf16.mxu0 %v1420
        %1494 = vmatpush2.bf16.msra.mxu0 %v1419
        %1495 = vmatprep.subr.bf16.mxu0 %v1418
        %1496 = vmatpush2.bf16.msra.mxu0 %v1417
        %1497 = vmatprep.mubr.bf16.mxu0 %v1264
        %1498 = vmatmul.mubr.bf16.gmra.mxu0 %v1263
        %v1499 = vpop.f32.mrf.mxu0
        %v1500 = vadd.f32 %v1300, %v1499
        %v1501 = vpop.f32.mrf.mxu0
        %v1502 = vadd.f32 %v1304, %v1501
        %v1503 = vpop.f32.mrf.mxu0
        %v1504 = vpop.f32.mrf.mxu0
        %1505 = vdwg.mxu0
        %v1506 = vadd.f32 %v320, %v1500
        %v1507 = vadd.f32 %v321, %v1502
        %v1508 = vadd.f32 %v1506, %v1507
        %1509 = vadd.xlane.f32.xlu0 %v1508
        %v1510 = vpop.xlane.xlu0 %1509
        %v1511 = vmul.f32 %v1510, %v288
        %v1512 = vsub.f32 %v1506, %v1511
        %v1513 = vsub.f32 %v1507, %v1511
        %v1514 = vmul.f32 %v1512, %v1512
        %v1515 = vmul.f32 %v1513, %v1513
        %v1516 = vadd.f32 %v1514, %v1515
        %1517 = vadd.xlane.f32.xlu0 %v1516
        %v1518 = vpop.xlane.xlu0 %1517
        %v1519 = vmul.f32 %v1518, %v288
        %v1520 = vadd.f32 %v1519, 1e-12
        %v1521 = vrsqrt.pop %v1520
        %v1522 = vmul.f32 %v1512, %v1521
        %v1523 = vmul.f32 %v1513, %v1521
        %v1524 = vlaneseq
        %v1525 = vshrl.u32 %v1524, 7
        %v1526 = vsub.s32 3, %v1525
        %v1527 = vrot.slane %v283, %v1526
        %v1528 = vlaneseq
        %v1529 = vshrl.u32 %v1528, 7
        %v1530 = vsub.s32 3, %v1529
        %v1531 = vrot.slane %v284, %v1530
        %v1532 = vmul.f32 %v1522, %v1527
        %v1533 = vmul.f32 %v1523, %v1531
        %v1534 = vlaneseq
        %v1535 = vshrl.u32 %v1534, 7
        %v1536 = vsub.s32 4, %v1535
        %v1537 = vrot.slane %v279, %v1536
        %v1538 = vlaneseq
        %v1539 = vshrl.u32 %v1538, 7
        %v1540 = vsub.s32 4, %v1539
        %v1541 = vrot.slane %v280, %v1540
        %v1542 = vadd.f32 %v1532, %v1537
        %v1543 = vadd.f32 %v1533, %v1541
        %v1544 = vpack.c.bf16 %v1542, %v1542
        %v1545 = vpack.c.bf16 %v1543, %v1543
        %v1546 = vld [vmem:[#allocation7 + $0x20] sm:$0xff]
        %v1547 = vld [vmem:[#allocation7 + $0x28] sm:$0xff]
        %v1548 = vld [vmem:[#allocation7 + $0x6c] sm:$0xff]
        %v1549 = vld [vmem:[#allocation7 + $0x74] sm:$0xff]
        %v1550 = vld [vmem:[#allocation7 + $0xb8] sm:$0xff]
        %v1551 = vld [vmem:[#allocation7 + $0xc0] sm:$0xff]
        %v1552 = vld [vmem:[#allocation7 + $0x104] sm:$0xff]
        %v1553 = vld [vmem:[#allocation7 + $0x10c] sm:$0xff]
        %v1554 = vld [vmem:[#allocation7 + $0x150] sm:$0xff]
        %v1555 = vld [vmem:[#allocation7 + $0x158] sm:$0xff]
        %v1556 = vld [vmem:[#allocation7 + $0x19c] sm:$0xff]
        %v1557 = vld [vmem:[#allocation7 + $0x1a4] sm:$0xff]
        %v1558 = vld [vmem:[#allocation7 + $0x1e8] sm:$0xff]
        %v1559 = vld [vmem:[#allocation7 + $0x1f0] sm:$0xff]
        %v1560 = vld [vmem:[#allocation7 + $0x234] sm:$0xff]
        %v1561 = vld [vmem:[#allocation7 + $0x23c] sm:$0xff]
        %v1562 = vld [vmem:[#allocation7 + $0x280] sm:$0xff]
        %v1563 = vld [vmem:[#allocation7 + $0x288] sm:$0xff]
        %v1564 = vld [vmem:[#allocation7 + $0x2cc] sm:$0xff]
        %v1565 = vld [vmem:[#allocation7 + $0x2d4] sm:$0xff]
        %v1566 = vld [vmem:[#allocation7 + $0x318] sm:$0xff]
        %v1567 = vld [vmem:[#allocation7 + $0x320] sm:$0xff]
        %v1568 = vld [vmem:[#allocation7 + $0x364] sm:$0xff]
        %v1569 = vld [vmem:[#allocation7 + $0x36c] sm:$0xff]
        %v1570 = vld [vmem:[#allocation7 + $0x3b0] sm:$0xff]
        %v1571 = vld [vmem:[#allocation7 + $0x3b8] sm:$0xff]
        %v1572 = vld [vmem:[#allocation7 + $0x3fc] sm:$0xff]
        %v1573 = vld [vmem:[#allocation7 + $0x404] sm:$0xff]
        %v1574 = vld [vmem:[#allocation7 + $0x448] sm:$0xff]
        %v1575 = vld [vmem:[#allocation7 + $0x450] sm:$0xff]
        %v1576 = vld [vmem:[#allocation7 + $0x494] sm:$0xff]
        %v1577 = vld [vmem:[#allocation7 + $0x49c] sm:$0xff]
        %v1578 = vld [vmem:[#allocation7 + $0x4e0] sm:$0xff]
        %v1579 = vld [vmem:[#allocation7 + $0x4e8] sm:$0xff]
        %v1580 = vld [vmem:[#allocation7 + $0x52c] sm:$0xff]
        %v1581 = vld [vmem:[#allocation7 + $0x534] sm:$0xff]
        %v1582 = vld [vmem:[#allocation7 + $0x578] sm:$0xff]
        %v1583 = vld [vmem:[#allocation7 + $0x580] sm:$0xff]
        %v1584 = vld [vmem:[#allocation7 + $0x5c4] sm:$0xff]
        %v1585 = vld [vmem:[#allocation7 + $0x5cc] sm:$0xff]
        %v1586 = vld [vmem:[#allocation7 + $0x610] sm:$0xff]
        %v1587 = vld [vmem:[#allocation7 + $0x618] sm:$0xff]
        %v1588 = vld [vmem:[#allocation7 + $0x65c] sm:$0xff]
        %v1589 = vld [vmem:[#allocation7 + $0x664] sm:$0xff]
        %v1590 = vld [vmem:[#allocation7 + $0x6a8] sm:$0xff]
        %v1591 = vld [vmem:[#allocation7 + $0x6b0] sm:$0xff]
        %v1592 = vld [vmem:[#allocation7 + $0x6f4] sm:$0xff]
        %v1593 = vld [vmem:[#allocation7 + $0x6fc] sm:$0xff]
        %v1594 = vld [vmem:[#allocation7 + $0x740] sm:$0xff]
        %v1595 = vld [vmem:[#allocation7 + $0x748] sm:$0xff]
        %v1596 = vld [vmem:[#allocation7 + $0x78c] sm:$0xff]
        %v1597 = vld [vmem:[#allocation7 + $0x794] sm:$0xff]
        %v1598 = vld [vmem:[#allocation7 + $0x7d8] sm:$0xff]
        %v1599 = vld [vmem:[#allocation7 + $0x7e0] sm:$0xff]
        %v1600 = vld [vmem:[#allocation7 + $0x824] sm:$0xff]
        %v1601 = vld [vmem:[#allocation7 + $0x82c] sm:$0xff]
        %v1602 = vld [vmem:[#allocation7 + $0x870] sm:$0xff]
        %v1603 = vld [vmem:[#allocation7 + $0x878] sm:$0xff]
        %v1604 = vld [vmem:[#allocation7 + $0x8bc] sm:$0xff]
        %v1605 = vld [vmem:[#allocation7 + $0x8c4] sm:$0xff]
        %v1606 = vld [vmem:[#allocation7 + $0x908] sm:$0xff]
        %v1607 = vld [vmem:[#allocation7 + $0x910] sm:$0xff]
        %v1608 = vld [vmem:[#allocation7 + $0x954] sm:$0xff]
        %v1609 = vld [vmem:[#allocation7 + $0x95c] sm:$0xff]
        %v1610 = vlaneseq
        %v1611 = vshrl.u32 %v1610, 7
        %v1612 = vsub.s32 2, %v1611
        %v1613 = vrot.slane %v279, %v1612
        %v1614 = vlaneseq
        %v1615 = vshrl.u32 %v1614, 7
        %v1616 = vsub.s32 2, %v1615
        %v1617 = vrot.slane %v280, %v1616
        %v1618 = vlaneseq
        %v1619 = vshrl.u32 %v1618, 7
        %v1620 = vsub.s32 2, %v1619
        %v1621 = vrot.slane %v281, %v1620
        %v1622 = vlaneseq
        %v1623 = vshrl.u32 %v1622, 7
        %v1624 = vsub.s32 2, %v1623
        %v1625 = vrot.slane %v282, %v1624
        %v1690 = vunpack.c.l.b16 %v1546
        %v1691 = vunpack.c.h.b16 %v1546
        %v1692 = vunpack.c.l.b16 %v1547
        %v1693 = vunpack.c.h.b16 %v1547
        %v1694 = vunpack.c.l.b16 %v1548
        %v1695 = vunpack.c.h.b16 %v1548
        %v1696 = vunpack.c.l.b16 %v1549
        %v1697 = vunpack.c.h.b16 %v1549
        %v1698 = vunpack.c.l.b16 %v1550
        %v1699 = vunpack.c.h.b16 %v1550
        %v1700 = vunpack.c.l.b16 %v1551
        %v1701 = vunpack.c.h.b16 %v1551
        %v1702 = vunpack.c.l.b16 %v1552
        %v1703 = vunpack.c.h.b16 %v1552
        %v1704 = vunpack.c.l.b16 %v1553
        %v1705 = vunpack.c.h.b16 %v1553
        %v1706 = vunpack.c.l.b16 %v1554
        %v1707 = vunpack.c.h.b16 %v1554
        %v1708 = vunpack.c.l.b16 %v1555
        %v1709 = vunpack.c.h.b16 %v1555
        %v1710 = vunpack.c.l.b16 %v1556
        %v1711 = vunpack.c.h.b16 %v1556
        %v1712 = vunpack.c.l.b16 %v1557
        %v1713 = vunpack.c.h.b16 %v1557
        %v1714 = vunpack.c.l.b16 %v1558
        %v1715 = vunpack.c.h.b16 %v1558
        %v1716 = vunpack.c.l.b16 %v1559
        %v1717 = vunpack.c.h.b16 %v1559
        %v1718 = vunpack.c.l.b16 %v1560
        %v1719 = vunpack.c.h.b16 %v1560
        %v1720 = vunpack.c.l.b16 %v1561
        %v1721 = vunpack.c.h.b16 %v1561
        %v1722 = vunpack.c.l.b16 %v1562
        %v1723 = vunpack.c.h.b16 %v1562
        %v1724 = vunpack.c.l.b16 %v1563
        %v1725 = vunpack.c.h.b16 %v1563
        %v1726 = vunpack.c.l.b16 %v1564
        %v1727 = vunpack.c.h.b16 %v1564
        %v1728 = vunpack.c.l.b16 %v1565
        %v1729 = vunpack.c.h.b16 %v1565
        %v1730 = vunpack.c.l.b16 %v1566
        %v1731 = vunpack.c.h.b16 %v1566
        %v1732 = vunpack.c.l.b16 %v1567
        %v1733 = vunpack.c.h.b16 %v1567
        %v1734 = vunpack.c.l.b16 %v1568
        %v1735 = vunpack.c.h.b16 %v1568
        %v1736 = vunpack.c.l.b16 %v1569
        %v1737 = vunpack.c.h.b16 %v1569
        %v1738 = vunpack.c.l.b16 %v1570
        %v1739 = vunpack.c.h.b16 %v1570
        %v1740 = vunpack.c.l.b16 %v1571
        %v1741 = vunpack.c.h.b16 %v1571
        %v1742 = vunpack.c.l.b16 %v1572
        %v1743 = vunpack.c.h.b16 %v1572
        %v1744 = vunpack.c.l.b16 %v1573
        %v1745 = vunpack.c.h.b16 %v1573
        %v1746 = vunpack.c.l.b16 %v1574
        %v1747 = vunpack.c.h.b16 %v1574
        %v1748 = vunpack.c.l.b16 %v1575
        %v1749 = vunpack.c.h.b16 %v1575
        %v1750 = vunpack.c.l.b16 %v1576
        %v1751 = vunpack.c.h.b16 %v1576
        %v1752 = vunpack.c.l.b16 %v1577
        %v1753 = vunpack.c.h.b16 %v1577
        %v1754 = vunpack.c.l.b16 %v1578
        %v1755 = vunpack.c.h.b16 %v1578
        %v1756 = vunpack.c.l.b16 %v1579
        %v1757 = vunpack.c.h.b16 %v1579
        %v1758 = vunpack.c.l.b16 %v1580
        %v1759 = vunpack.c.h.b16 %v1580
        %v1760 = vunpack.c.l.b16 %v1581
        %v1761 = vunpack.c.h.b16 %v1581
        %v1762 = vunpack.c.l.b16 %v1582
        %v1763 = vunpack.c.h.b16 %v1582
        %v1764 = vunpack.c.l.b16 %v1583
        %v1765 = vunpack.c.h.b16 %v1583
        %v1766 = vunpack.c.l.b16 %v1584
        %v1767 = vunpack.c.h.b16 %v1584
        %v1768 = vunpack.c.l.b16 %v1585
        %v1769 = vunpack.c.h.b16 %v1585
        %v1770 = vunpack.c.l.b16 %v1586
        %v1771 = vunpack.c.h.b16 %v1586
        %v1772 = vunpack.c.l.b16 %v1587
        %v1773 = vunpack.c.h.b16 %v1587
        %v1774 = vunpack.c.l.b16 %v1588
        %v1775 = vunpack.c.h.b16 %v1588
        %v1776 = vunpack.c.l.b16 %v1589
        %v1777 = vunpack.c.h.b16 %v1589
        %v1778 = vunpack.c.l.b16 %v1590
        %v1779 = vunpack.c.h.b16 %v1590
        %v1780 = vunpack.c.l.b16 %v1591
        %v1781 = vunpack.c.h.b16 %v1591
        %v1782 = vunpack.c.l.b16 %v1592
        %v1783 = vunpack.c.h.b16 %v1592
        %v1784 = vunpack.c.l.b16 %v1593
        %v1785 = vunpack.c.h.b16 %v1593
        %v1786 = vunpack.c.l.b16 %v1594
        %v1787 = vunpack.c.h.b16 %v1594
        %v1788 = vunpack.c.l.b16 %v1595
        %v1789 = vunpack.c.h.b16 %v1595
        %v1790 = vunpack.c.l.b16 %v1596
        %v1791 = vunpack.c.h.b16 %v1596
        %v1792 = vunpack.c.l.b16 %v1597
        %v1793 = vunpack.c.h.b16 %v1597
        %v1794 = vunpack.c.l.b16 %v1598
        %v1795 = vunpack.c.h.b16 %v1598
        %v1796 = vunpack.c.l.b16 %v1599
        %v1797 = vunpack.c.h.b16 %v1599
        %v1798 = vunpack.c.l.b16 %v1600
        %v1799 = vunpack.c.h.b16 %v1600
        %v1800 = vunpack.c.l.b16 %v1601
        %v1801 = vunpack.c.h.b16 %v1601
        %v1802 = vunpack.c.l.b16 %v1602
        %v1803 = vunpack.c.h.b16 %v1602
        %v1804 = vunpack.c.l.b16 %v1603
        %v1805 = vunpack.c.h.b16 %v1603
        %v1806 = vunpack.c.l.b16 %v1604
        %v1807 = vunpack.c.h.b16 %v1604
        %v1808 = vunpack.c.l.b16 %v1605
        %v1809 = vunpack.c.h.b16 %v1605
        %v1810 = vunpack.c.l.b16 %v1606
        %v1811 = vunpack.c.h.b16 %v1606
        %v1812 = vunpack.c.l.b16 %v1607
        %v1813 = vunpack.c.h.b16 %v1607
        %v1814 = vunpack.c.l.b16 %v1608
        %v1815 = vunpack.c.h.b16 %v1608
        %v1816 = vunpack.c.l.b16 %v1609
        %v1817 = vunpack.c.h.b16 %v1609
        %v1818 = vpack.c.b16 %v1694, %v1690
        %v1819 = vpack.c.b16 %v1695, %v1691
        %v1820 = vpack.c.b16 %v1696, %v1692
        %v1821 = vpack.c.b16 %v1697, %v1693
        %v1822 = vpack.c.b16 %v1702, %v1698
        %v1823 = vpack.c.b16 %v1703, %v1699
        %v1824 = vpack.c.b16 %v1704, %v1700
        %v1825 = vpack.c.b16 %v1705, %v1701
        %v1826 = vpack.c.b16 %v1710, %v1706
        %v1827 = vpack.c.b16 %v1711, %v1707
        %v1828 = vpack.c.b16 %v1712, %v1708
        %v1829 = vpack.c.b16 %v1713, %v1709
        %v1830 = vpack.c.b16 %v1718, %v1714
        %v1831 = vpack.c.b16 %v1719, %v1715
        %v1832 = vpack.c.b16 %v1720, %v1716
        %v1833 = vpack.c.b16 %v1721, %v1717
        %v1834 = vpack.c.b16 %v1726, %v1722
        %v1835 = vpack.c.b16 %v1727, %v1723
        %v1836 = vpack.c.b16 %v1728, %v1724
        %v1837 = vpack.c.b16 %v1729, %v1725
        %v1838 = vpack.c.b16 %v1734, %v1730
        %v1839 = vpack.c.b16 %v1735, %v1731
        %v1840 = vpack.c.b16 %v1736, %v1732
        %v1841 = vpack.c.b16 %v1737, %v1733
        %v1842 = vpack.c.b16 %v1742, %v1738
        %v1843 = vpack.c.b16 %v1743, %v1739
        %v1844 = vpack.c.b16 %v1744, %v1740
        %v1845 = vpack.c.b16 %v1745, %v1741
        %v1846 = vpack.c.b16 %v1750, %v1746
        %v1847 = vpack.c.b16 %v1751, %v1747
        %v1848 = vpack.c.b16 %v1752, %v1748
        %v1849 = vpack.c.b16 %v1753, %v1749
        %v1850 = vpack.c.b16 %v1758, %v1754
        %v1851 = vpack.c.b16 %v1759, %v1755
        %v1852 = vpack.c.b16 %v1760, %v1756
        %v1853 = vpack.c.b16 %v1761, %v1757
        %v1854 = vpack.c.b16 %v1766, %v1762
        %v1855 = vpack.c.b16 %v1767, %v1763
        %v1856 = vpack.c.b16 %v1768, %v1764
        %v1857 = vpack.c.b16 %v1769, %v1765
        %v1858 = vpack.c.b16 %v1774, %v1770
        %v1859 = vpack.c.b16 %v1775, %v1771
        %v1860 = vpack.c.b16 %v1776, %v1772
        %v1861 = vpack.c.b16 %v1777, %v1773
        %v1862 = vpack.c.b16 %v1782, %v1778
        %v1863 = vpack.c.b16 %v1783, %v1779
        %v1864 = vpack.c.b16 %v1784, %v1780
        %v1865 = vpack.c.b16 %v1785, %v1781
        %v1866 = vpack.c.b16 %v1790, %v1786
        %v1867 = vpack.c.b16 %v1791, %v1787
        %v1868 = vpack.c.b16 %v1792, %v1788
        %v1869 = vpack.c.b16 %v1793, %v1789
        %v1870 = vpack.c.b16 %v1798, %v1794
        %v1871 = vpack.c.b16 %v1799, %v1795
        %v1872 = vpack.c.b16 %v1800, %v1796
        %v1873 = vpack.c.b16 %v1801, %v1797
        %v1874 = vpack.c.b16 %v1806, %v1802
        %v1875 = vpack.c.b16 %v1807, %v1803
        %v1876 = vpack.c.b16 %v1808, %v1804
        %v1877 = vpack.c.b16 %v1809, %v1805
        %v1878 = vpack.c.b16 %v1814, %v1810
        %v1879 = vpack.c.b16 %v1815, %v1811
        %v1880 = vpack.c.b16 %v1816, %v1812
        %v1881 = vpack.c.b16 %v1817, %v1813
        %1946 = vmatprep.subr.bf16.mxu0 %v1847
        %1947 = vmatpush1.bf16.msra.mxu0 %v1846
        %1948 = vmatprep.subr.bf16.mxu0 %v1843
        %1949 = vmatpush1.bf16.msra.mxu0 %v1842
        %1950 = vmatprep.subr.bf16.mxu0 %v1839
        %1951 = vmatpush1.bf16.msra.mxu0 %v1838
        %1952 = vmatprep.subr.bf16.mxu0 %v1835
        %1953 = vmatpush1.bf16.msra.mxu0 %v1834
        %1954 = vmatprep.subr.bf16.mxu0 %v1831
        %1955 = vmatpush1.bf16.msra.mxu0 %v1830
        %1956 = vmatprep.subr.bf16.mxu0 %v1827
        %1957 = vmatpush1.bf16.msra.mxu0 %v1826
        %1958 = vmatprep.subr.bf16.mxu0 %v1823
        %1959 = vmatpush1.bf16.msra.mxu0 %v1822
        %1960 = vmatprep.subr.bf16.mxu0 %v1819
        %1961 = vmatpush1.bf16.msra.mxu0 %v1818
        %1962 = vmatprep.subr.bf16.mxu0 %v1879
        %1963 = vmatpush2.bf16.msra.mxu0 %v1878
        %1964 = vmatprep.subr.bf16.mxu0 %v1875
        %1965 = vmatpush2.bf16.msra.mxu0 %v1874
        %1966 = vmatprep.subr.bf16.mxu0 %v1871
        %1967 = vmatpush2.bf16.msra.mxu0 %v1870
        %1968 = vmatprep.subr.bf16.mxu0 %v1867
        %1969 = vmatpush2.bf16.msra.mxu0 %v1866
        %1970 = vmatprep.subr.bf16.mxu0 %v1863
        %1971 = vmatpush2.bf16.msra.mxu0 %v1862
        %1972 = vmatprep.subr.bf16.mxu0 %v1859
        %1973 = vmatpush2.bf16.msra.mxu0 %v1858
        %1974 = vmatprep.subr.bf16.mxu0 %v1855
        %1975 = vmatpush2.bf16.msra.mxu0 %v1854
        %1976 = vmatprep.subr.bf16.mxu0 %v1851
        %1977 = vmatpush2.bf16.msra.mxu0 %v1850
        %1978 = vmatprep.mubr.bf16.mxu0 %v1545
        %1979 = vmatmul.mubr.bf16.gmra.mxu0 %v1544
        %v1980 = vpop.f32.mrf.mxu0
        %v1981 = vadd.f32 %v1613, %v1980
        %v1982 = vpop.f32.mrf.mxu0
        %v1983 = vadd.f32 %v1617, %v1982
        %v1984 = vpop.f32.mrf.mxu0
        %v1985 = vpop.f32.mrf.mxu0
        %1986 = vdwg.mxu0
        %1987 = vmatprep.subr.bf16.mxu0 %v1849
        %1988 = vmatpush1.bf16.msra.mxu0 %v1848
        %1989 = vmatprep.subr.bf16.mxu0 %v1845
        %1990 = vmatpush1.bf16.msra.mxu0 %v1844
        %1991 = vmatprep.subr.bf16.mxu0 %v1841
        %1992 = vmatpush1.bf16.msra.mxu0 %v1840
        %1993 = vmatprep.subr.bf16.mxu0 %v1837
        %1994 = vmatpush1.bf16.msra.mxu0 %v1836
        %1995 = vmatprep.subr.bf16.mxu0 %v1833
        %1996 = vmatpush1.bf16.msra.mxu0 %v1832
        %1997 = vmatprep.subr.bf16.mxu0 %v1829
        %1998 = vmatpush1.bf16.msra.mxu0 %v1828
        %1999 = vmatprep.subr.bf16.mxu0 %v1825
        %2000 = vmatpush1.bf16.msra.mxu0 %v1824
        %2001 = vmatprep.subr.bf16.mxu0 %v1821
        %2002 = vmatpush1.bf16.msra.mxu0 %v1820
        %2003 = vmatprep.subr.bf16.mxu0 %v1881
        %2004 = vmatpush2.bf16.msra.mxu0 %v1880
        %2005 = vmatprep.subr.bf16.mxu0 %v1877
        %2006 = vmatpush2.bf16.msra.mxu0 %v1876
        %2007 = vmatprep.subr.bf16.mxu0 %v1873
        %2008 = vmatpush2.bf16.msra.mxu0 %v1872
        %2009 = vmatprep.subr.bf16.mxu0 %v1869
        %2010 = vmatpush2.bf16.msra.mxu0 %v1868
        %2011 = vmatprep.subr.bf16.mxu0 %v1865
        %2012 = vmatpush2.bf16.msra.mxu0 %v1864
        %2013 = vmatprep.subr.bf16.mxu0 %v1861
        %2014 = vmatpush2.bf16.msra.mxu0 %v1860
        %2015 = vmatprep.subr.bf16.mxu0 %v1857
        %2016 = vmatpush2.bf16.msra.mxu0 %v1856
        %2017 = vmatprep.subr.bf16.mxu0 %v1853
        %2018 = vmatpush2.bf16.msra.mxu0 %v1852
        %2019 = vmatprep.mubr.bf16.mxu0 %v1545
        %2020 = vmatmul.mubr.bf16.gmra.mxu0 %v1544
        %v2021 = vpop.f32.mrf.mxu0
        %v2022 = vadd.f32 %v1621, %v2021
        %v2023 = vpop.f32.mrf.mxu0
        %v2024 = vadd.f32 %v1625, %v2023
        %v2025 = vpop.f32.mrf.mxu0
        %v2026 = vpop.f32.mrf.mxu0
        %2027 = vdwg.mxu0
        %v2028 = vmul.f32 %v1981, %v1981
        %v2029 = vmul.f32 %v1983, %v1983
        %v2030 = vmul.f32 %v2022, %v2022
        %v2031 = vmul.f32 %v2024, %v2024
        %v2032 = vmul.f32 %v1981, %v2028
        %v2033 = vmul.f32 %v1983, %v2029
        %v2034 = vmul.f32 %v2022, %v2030
        %v2035 = vmul.f32 %v2024, %v2031
        %v2036 = vmul.f32 %v2032, 0.044715
        %v2037 = vmul.f32 %v2033, 0.044715
        %v2038 = vmul.f32 %v2034, 0.044715
        %v2039 = vmul.f32 %v2035, 0.044715
        %v2040 = vadd.f32 %v1981, %v2036
        %v2041 = vadd.f32 %v1983, %v2037
        %v2042 = vadd.f32 %v2022, %v2038
        %v2043 = vadd.f32 %v2024, %v2039
        %v2044 = vmul.f32 %v2040, 0.7978846
        %v2045 = vmul.f32 %v2041, 0.7978846
        %v2046 = vmul.f32 %v2042, 0.7978846
        %v2047 = vmul.f32 %v2043, 0.7978846
        %v2048 = vtanh.pop %v2044
        %v2049 = vtanh.pop %v2045
        %v2050 = vtanh.pop %v2046
        %v2051 = vtanh.pop %v2047
        %v2052 = vadd.f32 %v2048, 1.0
        %v2053 = vadd.f32 %v2049, 1.0
        %v2054 = vadd.f32 %v2050, 1.0
        %v2055 = vadd.f32 %v2051, 1.0
        %v2056 = vmul.f32 %v2052, 0.5
        %v2057 = vmul.f32 %v2053, 0.5
        %v2058 = vmul.f32 %v2054, 0.5
        %v2059 = vmul.f32 %v2055, 0.5
        %v2060 = vmul.f32 %v1981, %v2056
        %v2061 = vmul.f32 %v1983, %v2057
        %v2062 = vmul.f32 %v2022, %v2058
        %v2063 = vmul.f32 %v2024, %v2059
        %v2064 = vpack.c.bf16 %v2060, %v2060
        %v2065 = vpack.c.bf16 %v2061, %v2061
        %v2066 = vpack.c.bf16 %v2062, %v2062
        %v2067 = vpack.c.bf16 %v2063, %v2063
        %v2068 = vld [vmem:[#allocation7 + $0x3c] sm:$0xff]
        %v2069 = vld [vmem:[#allocation7 + $0x44] sm:$0xff]
        %v2070 = vld [vmem:[#allocation7 + $0x88] sm:$0xff]
        %v2071 = vld [vmem:[#allocation7 + $0x90] sm:$0xff]
        %v2072 = vld [vmem:[#allocation7 + $0xd4] sm:$0xff]
        %v2073 = vld [vmem:[#allocation7 + $0xdc] sm:$0xff]
        %v2074 = vld [vmem:[#allocation7 + $0x120] sm:$0xff]
        %v2075 = vld [vmem:[#allocation7 + $0x128] sm:$0xff]
        %v2076 = vld [vmem:[#allocation7 + $0x16c] sm:$0xff]
        %v2077 = vld [vmem:[#allocation7 + $0x174] sm:$0xff]
        %v2078 = vld [vmem:[#allocation7 + $0x1b8] sm:$0xff]
        %v2079 = vld [vmem:[#allocation7 + $0x1c0] sm:$0xff]
        %v2080 = vld [vmem:[#allocation7 + $0x204] sm:$0xff]
        %v2081 = vld [vmem:[#allocation7 + $0x20c] sm:$0xff]
        %v2082 = vld [vmem:[#allocation7 + $0x250] sm:$0xff]
        %v2083 = vld [vmem:[#allocation7 + $0x258] sm:$0xff]
        %v2084 = vld [vmem:[#allocation7 + $0x29c] sm:$0xff]
        %v2085 = vld [vmem:[#allocation7 + $0x2a4] sm:$0xff]
        %v2086 = vld [vmem:[#allocation7 + $0x2e8] sm:$0xff]
        %v2087 = vld [vmem:[#allocation7 + $0x2f0] sm:$0xff]
        %v2088 = vld [vmem:[#allocation7 + $0x334] sm:$0xff]
        %v2089 = vld [vmem:[#allocation7 + $0x33c] sm:$0xff]
        %v2090 = vld [vmem:[#allocation7 + $0x380] sm:$0xff]
        %v2091 = vld [vmem:[#allocation7 + $0x388] sm:$0xff]
        %v2092 = vld [vmem:[#allocation7 + $0x3cc] sm:$0xff]
        %v2093 = vld [vmem:[#allocation7 + $0x3d4] sm:$0xff]
        %v2094 = vld [vmem:[#allocation7 + $0x418] sm:$0xff]
        %v2095 = vld [vmem:[#allocation7 + $0x420] sm:$0xff]
        %v2096 = vld [vmem:[#allocation7 + $0x464] sm:$0xff]
        %v2097 = vld [vmem:[#allocation7 + $0x46c] sm:$0xff]
        %v2098 = vld [vmem:[#allocation7 + $0x4b0] sm:$0xff]
        %v2099 = vld [vmem:[#allocation7 + $0x4b8] sm:$0xff]
        %v2100 = vld [vmem:[#allocation7 + $0x4fc] sm:$0xff]
        %v2101 = vld [vmem:[#allocation7 + $0x504] sm:$0xff]
        %v2102 = vld [vmem:[#allocation7 + $0x548] sm:$0xff]
        %v2103 = vld [vmem:[#allocation7 + $0x550] sm:$0xff]
        %v2104 = vld [vmem:[#allocation7 + $0x594] sm:$0xff]
        %v2105 = vld [vmem:[#allocation7 + $0x59c] sm:$0xff]
        %v2106 = vld [vmem:[#allocation7 + $0x5e0] sm:$0xff]
        %v2107 = vld [vmem:[#allocation7 + $0x5e8] sm:$0xff]
        %v2108 = vld [vmem:[#allocation7 + $0x62c] sm:$0xff]
        %v2109 = vld [vmem:[#allocation7 + $0x634] sm:$0xff]
        %v2110 = vld [vmem:[#allocation7 + $0x678] sm:$0xff]
        %v2111 = vld [vmem:[#allocation7 + $0x680] sm:$0xff]
        %v2112 = vld [vmem:[#allocation7 + $0x6c4] sm:$0xff]
        %v2113 = vld [vmem:[#allocation7 + $0x6cc] sm:$0xff]
        %v2114 = vld [vmem:[#allocation7 + $0x710] sm:$0xff]
        %v2115 = vld [vmem:[#allocation7 + $0x718] sm:$0xff]
        %v2116 = vld [vmem:[#allocation7 + $0x75c] sm:$0xff]
        %v2117 = vld [vmem:[#allocation7 + $0x764] sm:$0xff]
        %v2118 = vld [vmem:[#allocation7 + $0x7a8] sm:$0xff]
        %v2119 = vld [vmem:[#allocation7 + $0x7b0] sm:$0xff]
        %v2120 = vld [vmem:[#allocation7 + $0x7f4] sm:$0xff]
        %v2121 = vld [vmem:[#allocation7 + $0x7fc] sm:$0xff]
        %v2122 = vld [vmem:[#allocation7 + $0x840] sm:$0xff]
        %v2123 = vld [vmem:[#allocation7 + $0x848] sm:$0xff]
        %v2124 = vld [vmem:[#allocation7 + $0x88c] sm:$0xff]
        %v2125 = vld [vmem:[#allocation7 + $0x894] sm:$0xff]
        %v2126 = vld [vmem:[#allocation7 + $0x8d8] sm:$0xff]
        %v2127 = vld [vmem:[#allocation7 + $0x8e0] sm:$0xff]
        %v2128 = vld [vmem:[#allocation7 + $0x924] sm:$0xff]
        %v2129 = vld [vmem:[#allocation7 + $0x92c] sm:$0xff]
        %v2130 = vld [vmem:[#allocation7 + $0x970] sm:$0xff]
        %v2131 = vld [vmem:[#allocation7 + $0x978] sm:$0xff]
        %v2132 = vlaneseq
        %v2133 = vshrl.u32 %v2132, 7
        %v2134 = vsub.s32 1, %v2133
        %v2135 = vrot.slane %v281, %v2134
        %v2136 = vlaneseq
        %v2137 = vshrl.u32 %v2136, 7
        %v2138 = vsub.s32 1, %v2137
        %v2139 = vrot.slane %v282, %v2138
        %v2204 = vunpack.c.l.b16 %v2068
        %v2205 = vunpack.c.h.b16 %v2068
        %v2206 = vunpack.c.l.b16 %v2069
        %v2207 = vunpack.c.h.b16 %v2069
        %v2208 = vunpack.c.l.b16 %v2070
        %v2209 = vunpack.c.h.b16 %v2070
        %v2210 = vunpack.c.l.b16 %v2071
        %v2211 = vunpack.c.h.b16 %v2071
        %v2212 = vunpack.c.l.b16 %v2072
        %v2213 = vunpack.c.h.b16 %v2072
        %v2214 = vunpack.c.l.b16 %v2073
        %v2215 = vunpack.c.h.b16 %v2073
        %v2216 = vunpack.c.l.b16 %v2074
        %v2217 = vunpack.c.h.b16 %v2074
        %v2218 = vunpack.c.l.b16 %v2075
        %v2219 = vunpack.c.h.b16 %v2075
        %v2220 = vunpack.c.l.b16 %v2076
        %v2221 = vunpack.c.h.b16 %v2076
        %v2222 = vunpack.c.l.b16 %v2077
        %v2223 = vunpack.c.h.b16 %v2077
        %v2224 = vunpack.c.l.b16 %v2078
        %v2225 = vunpack.c.h.b16 %v2078
        %v2226 = vunpack.c.l.b16 %v2079
        %v2227 = vunpack.c.h.b16 %v2079
        %v2228 = vunpack.c.l.b16 %v2080
        %v2229 = vunpack.c.h.b16 %v2080
        %v2230 = vunpack.c.l.b16 %v2081
        %v2231 = vunpack.c.h.b16 %v2081
        %v2232 = vunpack.c.l.b16 %v2082
        %v2233 = vunpack.c.h.b16 %v2082
        %v2234 = vunpack.c.l.b16 %v2083
        %v2235 = vunpack.c.h.b16 %v2083
        %v2236 = vunpack.c.l.b16 %v2084
        %v2237 = vunpack.c.h.b16 %v2084
        %v2238 = vunpack.c.l.b16 %v2085
        %v2239 = vunpack.c.h.b16 %v2085
        %v2240 = vunpack.c.l.b16 %v2086
        %v2241 = vunpack.c.h.b16 %v2086
        %v2242 = vunpack.c.l.b16 %v2087
        %v2243 = vunpack.c.h.b16 %v2087
        %v2244 = vunpack.c.l.b16 %v2088
        %v2245 = vunpack.c.h.b16 %v2088
        %v2246 = vunpack.c.l.b16 %v2089
        %v2247 = vunpack.c.h.b16 %v2089
        %v2248 = vunpack.c.l.b16 %v2090
        %v2249 = vunpack.c.h.b16 %v2090
        %v2250 = vunpack.c.l.b16 %v2091
        %v2251 = vunpack.c.h.b16 %v2091
        %v2252 = vunpack.c.l.b16 %v2092
        %v2253 = vunpack.c.h.b16 %v2092
        %v2254 = vunpack.c.l.b16 %v2093
        %v2255 = vunpack.c.h.b16 %v2093
        %v2256 = vunpack.c.l.b16 %v2094
        %v2257 = vunpack.c.h.b16 %v2094
        %v2258 = vunpack.c.l.b16 %v2095
        %v2259 = vunpack.c.h.b16 %v2095
        %v2260 = vunpack.c.l.b16 %v2096
        %v2261 = vunpack.c.h.b16 %v2096
        %v2262 = vunpack.c.l.b16 %v2097
        %v2263 = vunpack.c.h.b16 %v2097
        %v2264 = vunpack.c.l.b16 %v2098
        %v2265 = vunpack.c.h.b16 %v2098
        %v2266 = vunpack.c.l.b16 %v2099
        %v2267 = vunpack.c.h.b16 %v2099
        %v2268 = vunpack.c.l.b16 %v2100
        %v2269 = vunpack.c.h.b16 %v2100
        %v2270 = vunpack.c.l.b16 %v2101
        %v2271 = vunpack.c.h.b16 %v2101
        %v2272 = vunpack.c.l.b16 %v2102
        %v2273 = vunpack.c.h.b16 %v2102
        %v2274 = vunpack.c.l.b16 %v2103
        %v2275 = vunpack.c.h.b16 %v2103
        %v2276 = vunpack.c.l.b16 %v2104
        %v2277 = vunpack.c.h.b16 %v2104
        %v2278 = vunpack.c.l.b16 %v2105
        %v2279 = vunpack.c.h.b16 %v2105
        %v2280 = vunpack.c.l.b16 %v2106
        %v2281 = vunpack.c.h.b16 %v2106
        %v2282 = vunpack.c.l.b16 %v2107
        %v2283 = vunpack.c.h.b16 %v2107
        %v2284 = vunpack.c.l.b16 %v2108
        %v2285 = vunpack.c.h.b16 %v2108
        %v2286 = vunpack.c.l.b16 %v2109
        %v2287 = vunpack.c.h.b16 %v2109
        %v2288 = vunpack.c.l.b16 %v2110
        %v2289 = vunpack.c.h.b16 %v2110
        %v2290 = vunpack.c.l.b16 %v2111
        %v2291 = vunpack.c.h.b16 %v2111
        %v2292 = vunpack.c.l.b16 %v2112
        %v2293 = vunpack.c.h.b16 %v2112
        %v2294 = vunpack.c.l.b16 %v2113
        %v2295 = vunpack.c.h.b16 %v2113
        %v2296 = vunpack.c.l.b16 %v2114
        %v2297 = vunpack.c.h.b16 %v2114
        %v2298 = vunpack.c.l.b16 %v2115
        %v2299 = vunpack.c.h.b16 %v2115
        %v2300 = vunpack.c.l.b16 %v2116
        %v2301 = vunpack.c.h.b16 %v2116
        %v2302 = vunpack.c.l.b16 %v2117
        %v2303 = vunpack.c.h.b16 %v2117
        %v2304 = vunpack.c.l.b16 %v2118
        %v2305 = vunpack.c.h.b16 %v2118
        %v2306 = vunpack.c.l.b16 %v2119
        %v2307 = vunpack.c.h.b16 %v2119
        %v2308 = vunpack.c.l.b16 %v2120
        %v2309 = vunpack.c.h.b16 %v2120
        %v2310 = vunpack.c.l.b16 %v2121
        %v2311 = vunpack.c.h.b16 %v2121
        %v2312 = vunpack.c.l.b16 %v2122
        %v2313 = vunpack.c.h.b16 %v2122
        %v2314 = vunpack.c.l.b16 %v2123
        %v2315 = vunpack.c.h.b16 %v2123
        %v2316 = vunpack.c.l.b16 %v2124
        %v2317 = vunpack.c.h.b16 %v2124
        %v2318 = vunpack.c.l.b16 %v2125
        %v2319 = vunpack.c.h.b16 %v2125
        %v2320 = vunpack.c.l.b16 %v2126
        %v2321 = vunpack.c.h.b16 %v2126
        %v2322 = vunpack.c.l.b16 %v2127
        %v2323 = vunpack.c.h.b16 %v2127
        %v2324 = vunpack.c.l.b16 %v2128
        %v2325 = vunpack.c.h.b16 %v2128
        %v2326 = vunpack.c.l.b16 %v2129
        %v2327 = vunpack.c.h.b16 %v2129
        %v2328 = vunpack.c.l.b16 %v2130
        %v2329 = vunpack.c.h.b16 %v2130
        %v2330 = vunpack.c.l.b16 %v2131
        %v2331 = vunpack.c.h.b16 %v2131
        %v2332 = vpack.c.b16 %v2208, %v2204
        %v2333 = vpack.c.b16 %v2209, %v2205
        %v2334 = vpack.c.b16 %v2210, %v2206
        %v2335 = vpack.c.b16 %v2211, %v2207
        %v2336 = vpack.c.b16 %v2216, %v2212
        %v2337 = vpack.c.b16 %v2217, %v2213
        %v2338 = vpack.c.b16 %v2218, %v2214
        %v2339 = vpack.c.b16 %v2219, %v2215
        %v2340 = vpack.c.b16 %v2224, %v2220
        %v2341 = vpack.c.b16 %v2225, %v2221
        %v2342 = vpack.c.b16 %v2226, %v2222
        %v2343 = vpack.c.b16 %v2227, %v2223
        %v2344 = vpack.c.b16 %v2232, %v2228
        %v2345 = vpack.c.b16 %v2233, %v2229
        %v2346 = vpack.c.b16 %v2234, %v2230
        %v2347 = vpack.c.b16 %v2235, %v2231
        %v2348 = vpack.c.b16 %v2240, %v2236
        %v2349 = vpack.c.b16 %v2241, %v2237
        %v2350 = vpack.c.b16 %v2242, %v2238
        %v2351 = vpack.c.b16 %v2243, %v2239
        %v2352 = vpack.c.b16 %v2248, %v2244
        %v2353 = vpack.c.b16 %v2249, %v2245
        %v2354 = vpack.c.b16 %v2250, %v2246
        %v2355 = vpack.c.b16 %v2251, %v2247
        %v2356 = vpack.c.b16 %v2256, %v2252
        %v2357 = vpack.c.b16 %v2257, %v2253
        %v2358 = vpack.c.b16 %v2258, %v2254
        %v2359 = vpack.c.b16 %v2259, %v2255
        %v2360 = vpack.c.b16 %v2264, %v2260
        %v2361 = vpack.c.b16 %v2265, %v2261
        %v2362 = vpack.c.b16 %v2266, %v2262
        %v2363 = vpack.c.b16 %v2267, %v2263
        %v2364 = vpack.c.b16 %v2272, %v2268
        %v2365 = vpack.c.b16 %v2273, %v2269
        %v2366 = vpack.c.b16 %v2274, %v2270
        %v2367 = vpack.c.b16 %v2275, %v2271
        %v2368 = vpack.c.b16 %v2280, %v2276
        %v2369 = vpack.c.b16 %v2281, %v2277
        %v2370 = vpack.c.b16 %v2282, %v2278
        %v2371 = vpack.c.b16 %v2283, %v2279
        %v2372 = vpack.c.b16 %v2288, %v2284
        %v2373 = vpack.c.b16 %v2289, %v2285
        %v2374 = vpack.c.b16 %v2290, %v2286
        %v2375 = vpack.c.b16 %v2291, %v2287
        %v2376 = vpack.c.b16 %v2296, %v2292
        %v2377 = vpack.c.b16 %v2297, %v2293
        %v2378 = vpack.c.b16 %v2298, %v2294
        %v2379 = vpack.c.b16 %v2299, %v2295
        %v2380 = vpack.c.b16 %v2304, %v2300
        %v2381 = vpack.c.b16 %v2305, %v2301
        %v2382 = vpack.c.b16 %v2306, %v2302
        %v2383 = vpack.c.b16 %v2307, %v2303
        %v2384 = vpack.c.b16 %v2312, %v2308
        %v2385 = vpack.c.b16 %v2313, %v2309
        %v2386 = vpack.c.b16 %v2314, %v2310
        %v2387 = vpack.c.b16 %v2315, %v2311
        %v2388 = vpack.c.b16 %v2320, %v2316
        %v2389 = vpack.c.b16 %v2321, %v2317
        %v2390 = vpack.c.b16 %v2322, %v2318
        %v2391 = vpack.c.b16 %v2323, %v2319
        %v2392 = vpack.c.b16 %v2328, %v2324
        %v2393 = vpack.c.b16 %v2329, %v2325
        %v2394 = vpack.c.b16 %v2330, %v2326
        %v2395 = vpack.c.b16 %v2331, %v2327
        %2460 = vmatprep.subr.bf16.mxu0 %v2361
        %2461 = vmatpush1.bf16.xpose.msra.mxu0 %v2360
        %2462 = vmatprep.subr.bf16.mxu0 %v2357
        %2463 = vmatpush1.bf16.xpose.msra.mxu0 %v2356
        %2464 = vmatprep.subr.bf16.mxu0 %v2353
        %2465 = vmatpush1.bf16.xpose.msra.mxu0 %v2352
        %2466 = vmatprep.subr.bf16.mxu0 %v2349
        %2467 = vmatpush1.bf16.xpose.msra.mxu0 %v2348
        %2468 = vmatprep.subr.bf16.mxu0 %v2345
        %2469 = vmatpush1.bf16.xpose.msra.mxu0 %v2344
        %2470 = vmatprep.subr.bf16.mxu0 %v2341
        %2471 = vmatpush1.bf16.xpose.msra.mxu0 %v2340
        %2472 = vmatprep.subr.bf16.mxu0 %v2337
        %2473 = vmatpush1.bf16.xpose.msra.mxu0 %v2336
        %2474 = vmatprep.subr.bf16.mxu0 %v2333
        %2475 = vmatpush1.bf16.xpose.msra.mxu0 %v2332
        %2476 = vmatprep.subr.bf16.mxu0 %v2393
        %2477 = vmatpush2.bf16.xpose.msra.mxu0 %v2392
        %2478 = vmatprep.subr.bf16.mxu0 %v2389
        %2479 = vmatpush2.bf16.xpose.msra.mxu0 %v2388
        %2480 = vmatprep.subr.bf16.mxu0 %v2385
        %2481 = vmatpush2.bf16.xpose.msra.mxu0 %v2384
        %2482 = vmatprep.subr.bf16.mxu0 %v2381
        %2483 = vmatpush2.bf16.xpose.msra.mxu0 %v2380
        %2484 = vmatprep.subr.bf16.mxu0 %v2377
        %2485 = vmatpush2.bf16.xpose.msra.mxu0 %v2376
        %2486 = vmatprep.subr.bf16.mxu0 %v2373
        %2487 = vmatpush2.bf16.xpose.msra.mxu0 %v2372
        %2488 = vmatprep.subr.bf16.mxu0 %v2369
        %2489 = vmatpush2.bf16.xpose.msra.mxu0 %v2368
        %2490 = vmatprep.subr.bf16.mxu0 %v2365
        %2491 = vmatpush2.bf16.xpose.msra.mxu0 %v2364
        %2492 = vmatprep.mubr.bf16.mxu0 %v2065
        %2493 = vmatmul.mubr.bf16.gmra.mxu0 %v2064
        %v2494 = vpop.f32.mrf.mxu0
        %v2495 = vadd.f32 %v2135, %v2494
        %v2496 = vpop.f32.mrf.mxu0
        %v2497 = vadd.f32 %v2139, %v2496
        %v2498 = vpop.f32.mrf.mxu0
        %v2499 = vpop.f32.mrf.mxu0
        %2500 = vdwg.mxu0
        %2501 = vmatprep.subr.bf16.mxu0 %v2363
        %2502 = vmatpush1.bf16.xpose.msra.mxu0 %v2362
        %2503 = vmatprep.subr.bf16.mxu0 %v2359
        %2504 = vmatpush1.bf16.xpose.msra.mxu0 %v2358
        %2505 = vmatprep.subr.bf16.mxu0 %v2355
        %2506 = vmatpush1.bf16.xpose.msra.mxu0 %v2354
        %2507 = vmatprep.subr.bf16.mxu0 %v2351
        %2508 = vmatpush1.bf16.xpose.msra.mxu0 %v2350
        %2509 = vmatprep.subr.bf16.mxu0 %v2347
        %2510 = vmatpush1.bf16.xpose.msra.mxu0 %v2346
        %2511 = vmatprep.subr.bf16.mxu0 %v2343
        %2512 = vmatpush1.bf16.xpose.msra.mxu0 %v2342
        %2513 = vmatprep.subr.bf16.mxu0 %v2339
        %2514 = vmatpush1.bf16.xpose.msra.mxu0 %v2338
        %2515 = vmatprep.subr.bf16.mxu0 %v2335
        %2516 = vmatpush1.bf16.xpose.msra.mxu0 %v2334
        %2517 = vmatprep.subr.bf16.mxu0 %v2395
        %2518 = vmatpush2.bf16.xpose.msra.mxu0 %v2394
        %2519 = vmatprep.subr.bf16.mxu0 %v2391
        %2520 = vmatpush2.bf16.xpose.msra.mxu0 %v2390
        %2521 = vmatprep.subr.bf16.mxu0 %v2387
        %2522 = vmatpush2.bf16.xpose.msra.mxu0 %v2386
        %2523 = vmatprep.subr.bf16.mxu0 %v2383
        %2524 = vmatpush2.bf16.xpose.msra.mxu0 %v2382
        %2525 = vmatprep.subr.bf16.mxu0 %v2379
        %2526 = vmatpush2.bf16.xpose.msra.mxu0 %v2378
        %2527 = vmatprep.subr.bf16.mxu0 %v2375
        %2528 = vmatpush2.bf16.xpose.msra.mxu0 %v2374
        %2529 = vmatprep.subr.bf16.mxu0 %v2371
        %2530 = vmatpush2.bf16.xpose.msra.mxu0 %v2370
        %2531 = vmatprep.subr.bf16.mxu0 %v2367
        %2532 = vmatpush2.bf16.xpose.msra.mxu0 %v2366
        %2533 = vmatprep.mubr.bf16.mxu0 %v2067
        %2534 = vmatmul.mubr.bf16.gmra.mxu0 %v2066
        %v2535 = vpop.f32.mrf.mxu0
        %v2536 = vadd.f32 %v2495, %v2535
        %v2537 = vpop.f32.mrf.mxu0
        %v2538 = vadd.f32 %v2497, %v2537
        %v2539 = vpop.f32.mrf.mxu0
        %v2540 = vpop.f32.mrf.mxu0
        %2541 = vdwg.mxu0
        %v2542 = vadd.f32 %v1542, %v2536
        %v2543 = vadd.f32 %v1543, %v2538
        %v2544 = vadd.f32 %v2542, %v2543
        %2545 = vadd.xlane.f32.xlu0 %v2544
        %v2546 = vpop.xlane.xlu0 %2545
        %v2547 = vmul.f32 %v2546, %v288
        %v2548 = vsub.f32 %v2542, %v2547
        %v2549 = vsub.f32 %v2543, %v2547
        %v2550 = vmul.f32 %v2548, %v2548
        %v2551 = vmul.f32 %v2549, %v2549
        %v2552 = vadd.f32 %v2550, %v2551
        %2553 = vadd.xlane.f32.xlu0 %v2552
        %v2554 = vpop.xlane.xlu0 %2553
        %v2555 = vmul.f32 %v2554, %v288
        %v2556 = vadd.f32 %v2555, 1e-12
        %v2557 = vrsqrt.pop %v2556
        %v2558 = vmul.f32 %v2548, %v2557
        %v2559 = vmul.f32 %v2549, %v2557
        %v2560 = vlaneseq
        %v2561 = vshrl.u32 %v2560, 7
        %v2562 = vsub.s32 4, %v2561
        %v2563 = vrot.slane %v281, %v2562
        %v2564 = vlaneseq
        %v2565 = vshrl.u32 %v2564, 7
        %v2566 = vsub.s32 4, %v2565
        %v2567 = vrot.slane %v282, %v2566
        %v2568 = vmul.f32 %v2558, %v2563
        %v2569 = vmul.f32 %v2559, %v2567
        %v2570 = vlaneseq
        %v2571 = vshrl.u32 %v2570, 7
        %v2572 = vsub.s32 4, %v2571
        %v2573 = vrot.slane %v283, %v2572
        %v2574 = vlaneseq
        %v2575 = vshrl.u32 %v2574, 7
        %v2576 = vsub.s32 4, %v2575
        %v2577 = vrot.slane %v284, %v2576
        %v2578 = vadd.f32 %v2568, %v2573
        %v2579 = vadd.f32 %v2569, %v2577
        %v2580 = vpack.c.bf16 %v2578, %v2578
        %v2581 = vpack.c.bf16 %v2579, %v2579
        %v2582 = vld [vmem:[#allocation7 + $0x30] sm:$0xff]
        %v2583 = vld [vmem:[#allocation7 + $0x7c] sm:$0xff]
        %v2584 = vld [vmem:[#allocation7 + $0xc8] sm:$0xff]
        %v2585 = vld [vmem:[#allocation7 + $0x114] sm:$0xff]
        %v2586 = vld [vmem:[#allocation7 + $0x160] sm:$0xff]
        %v2587 = vld [vmem:[#allocation7 + $0x1ac] sm:$0xff]
        %v2588 = vld [vmem:[#allocation7 + $0x1f8] sm:$0xff]
        %v2589 = vld [vmem:[#allocation7 + $0x244] sm:$0xff]
        %v2590 = vld [vmem:[#allocation7 + $0x290] sm:$0xff]
        %v2591 = vld [vmem:[#allocation7 + $0x2dc] sm:$0xff]
        %v2592 = vld [vmem:[#allocation7 + $0x328] sm:$0xff]
        %v2593 = vld [vmem:[#allocation7 + $0x374] sm:$0xff]
        %v2594 = vld [vmem:[#allocation7 + $0x3c0] sm:$0xff]
        %v2595 = vld [vmem:[#allocation7 + $0x40c] sm:$0xff]
        %v2596 = vld [vmem:[#allocation7 + $0x458] sm:$0xff]
        %v2597 = vld [vmem:[#allocation7 + $0x4a4] sm:$0xff]
        %v2598 = vld [vmem:[#allocation7 + $0x4f0] sm:$0xff]
        %v2599 = vld [vmem:[#allocation7 + $0x53c] sm:$0xff]
        %v2600 = vld [vmem:[#allocation7 + $0x588] sm:$0xff]
        %v2601 = vld [vmem:[#allocation7 + $0x5d4] sm:$0xff]
        %v2602 = vld [vmem:[#allocation7 + $0x620] sm:$0xff]
        %v2603 = vld [vmem:[#allocation7 + $0x66c] sm:$0xff]
        %v2604 = vld [vmem:[#allocation7 + $0x6b8] sm:$0xff]
        %v2605 = vld [vmem:[#allocation7 + $0x704] sm:$0xff]
        %v2606 = vld [vmem:[#allocation7 + $0x750] sm:$0xff]
        %v2607 = vld [vmem:[#allocation7 + $0x79c] sm:$0xff]
        %v2608 = vld [vmem:[#allocation7 + $0x7e8] sm:$0xff]
        %v2609 = vld [vmem:[#allocation7 + $0x834] sm:$0xff]
        %v2610 = vld [vmem:[#allocation7 + $0x880] sm:$0xff]
        %v2611 = vld [vmem:[#allocation7 + $0x8cc] sm:$0xff]
        %v2612 = vld [vmem:[#allocation7 + $0x918] sm:$0xff]
        %v2613 = vld [vmem:[#allocation7 + $0x964] sm:$0xff]
        %v2614 = vlaneseq
        %v2615 = vshrl.u32 %v2614, 7
        %v2616 = vsub.s32 1, %v2615
        %v2617 = vrot.slane %v283, %v2616
        %v2618 = vlaneseq
        %v2619 = vshrl.u32 %v2618, 7
        %v2620 = vsub.s32 1, %v2619
        %v2621 = vrot.slane %v284, %v2620
        %v2654 = vunpack.c.l.b16 %v2582
        %v2655 = vunpack.c.h.b16 %v2582
        %v2656 = vunpack.c.l.b16 %v2583
        %v2657 = vunpack.c.h.b16 %v2583
        %v2658 = vunpack.c.l.b16 %v2584
        %v2659 = vunpack.c.h.b16 %v2584
        %v2660 = vunpack.c.l.b16 %v2585
        %v2661 = vunpack.c.h.b16 %v2585
        %v2662 = vunpack.c.l.b16 %v2586
        %v2663 = vunpack.c.h.b16 %v2586
        %v2664 = vunpack.c.l.b16 %v2587
        %v2665 = vunpack.c.h.b16 %v2587
        %v2666 = vunpack.c.l.b16 %v2588
        %v2667 = vunpack.c.h.b16 %v2588
        %v2668 = vunpack.c.l.b16 %v2589
        %v2669 = vunpack.c.h.b16 %v2589
        %v2670 = vunpack.c.l.b16 %v2590
        %v2671 = vunpack.c.h.b16 %v2590
        %v2672 = vunpack.c.l.b16 %v2591
        %v2673 = vunpack.c.h.b16 %v2591
        %v2674 = vunpack.c.l.b16 %v2592
        %v2675 = vunpack.c.h.b16 %v2592
        %v2676 = vunpack.c.l.b16 %v2593
        %v2677 = vunpack.c.h.b16 %v2593
        %v2678 = vunpack.c.l.b16 %v2594
        %v2679 = vunpack.c.h.b16 %v2594
        %v2680 = vunpack.c.l.b16 %v2595
        %v2681 = vunpack.c.h.b16 %v2595
        %v2682 = vunpack.c.l.b16 %v2596
        %v2683 = vunpack.c.h.b16 %v2596
        %v2684 = vunpack.c.l.b16 %v2597
        %v2685 = vunpack.c.h.b16 %v2597
        %v2686 = vunpack.c.l.b16 %v2598
        %v2687 = vunpack.c.h.b16 %v2598
        %v2688 = vunpack.c.l.b16 %v2599
        %v2689 = vunpack.c.h.b16 %v2599
        %v2690 = vunpack.c.l.b16 %v2600
        %v2691 = vunpack.c.h.b16 %v2600
        %v2692 = vunpack.c.l.b16 %v2601
        %v2693 = vunpack.c.h.b16 %v2601
        %v2694 = vunpack.c.l.b16 %v2602
        %v2695 = vunpack.c.h.b16 %v2602
        %v2696 = vunpack.c.l.b16 %v2603
        %v2697 = vunpack.c.h.b16 %v2603
        %v2698 = vunpack.c.l.b16 %v2604
        %v2699 = vunpack.c.h.b16 %v2604
        %v2700 = vunpack.c.l.b16 %v2605
        %v2701 = vunpack.c.h.b16 %v2605
        %v2702 = vunpack.c.l.b16 %v2606
        %v2703 = vunpack.c.h.b16 %v2606
        %v2704 = vunpack.c.l.b16 %v2607
        %v2705 = vunpack.c.h.b16 %v2607
        %v2706 = vunpack.c.l.b16 %v2608
        %v2707 = vunpack.c.h.b16 %v2608
        %v2708 = vunpack.c.l.b16 %v2609
        %v2709 = vunpack.c.h.b16 %v2609
        %v2710 = vunpack.c.l.b16 %v2610
        %v2711 = vunpack.c.h.b16 %v2610
        %v2712 = vunpack.c.l.b16 %v2611
        %v2713 = vunpack.c.h.b16 %v2611
        %v2714 = vunpack.c.l.b16 %v2612
        %v2715 = vunpack.c.h.b16 %v2612
        %v2716 = vunpack.c.l.b16 %v2613
        %v2717 = vunpack.c.h.b16 %v2613
        %v2718 = vpack.c.b16 %v2656, %v2654
        %v2719 = vpack.c.b16 %v2657, %v2655
        %v2720 = vpack.c.b16 %v2660, %v2658
        %v2721 = vpack.c.b16 %v2661, %v2659
        %v2722 = vpack.c.b16 %v2664, %v2662
        %v2723 = vpack.c.b16 %v2665, %v2663
        %v2724 = vpack.c.b16 %v2668, %v2666
        %v2725 = vpack.c.b16 %v2669, %v2667
        %v2726 = vpack.c.b16 %v2672, %v2670
        %v2727 = vpack.c.b16 %v2673, %v2671
        %v2728 = vpack.c.b16 %v2676, %v2674
        %v2729 = vpack.c.b16 %v2677, %v2675
        %v2730 = vpack.c.b16 %v2680, %v2678
        %v2731 = vpack.c.b16 %v2681, %v2679
        %v2732 = vpack.c.b16 %v2684, %v2682
        %v2733 = vpack.c.b16 %v2685, %v2683
        %v2734 = vpack.c.b16 %v2688, %v2686
        %v2735 = vpack.c.b16 %v2689, %v2687
        %v2736 = vpack.c.b16 %v2692, %v2690
        %v2737 = vpack.c.b16 %v2693, %v2691
        %v2738 = vpack.c.b16 %v2696, %v2694
        %v2739 = vpack.c.b16 %v2697, %v2695
        %v2740 = vpack.c.b16 %v2700, %v2698
        %v2741 = vpack.c.b16 %v2701, %v2699
        %v2742 = vpack.c.b16 %v2704, %v2702
        %v2743 = vpack.c.b16 %v2705, %v2703
        %v2744 = vpack.c.b16 %v2708, %v2706
        %v2745 = vpack.c.b16 %v2709, %v2707
        %v2746 = vpack.c.b16 %v2712, %v2710
        %v2747 = vpack.c.b16 %v2713, %v2711
        %v2748 = vpack.c.b16 %v2716, %v2714
        %v2749 = vpack.c.b16 %v2717, %v2715
        %2782 = vmatprep.subr.bf16.mxu0 %v2733
        %2783 = vmatpush1.bf16.msra.mxu0 %v2732
        %2784 = vmatprep.subr.bf16.mxu0 %v2731
        %2785 = vmatpush1.bf16.msra.mxu0 %v2730
        %2786 = vmatprep.subr.bf16.mxu0 %v2729
        %2787 = vmatpush1.bf16.msra.mxu0 %v2728
        %2788 = vmatprep.subr.bf16.mxu0 %v2727
        %2789 = vmatpush1.bf16.msra.mxu0 %v2726
        %2790 = vmatprep.subr.bf16.mxu0 %v2725
        %2791 = vmatpush1.bf16.msra.mxu0 %v2724
        %2792 = vmatprep.subr.bf16.mxu0 %v2723
        %2793 = vmatpush1.bf16.msra.mxu0 %v2722
        %2794 = vmatprep.subr.bf16.mxu0 %v2721
        %2795 = vmatpush1.bf16.msra.mxu0 %v2720
        %2796 = vmatprep.subr.bf16.mxu0 %v2719
        %2797 = vmatpush1.bf16.msra.mxu0 %v2718
        %2798 = vmatprep.subr.bf16.mxu0 %v2749
        %2799 = vmatpush2.bf16.msra.mxu0 %v2748
        %2800 = vmatprep.subr.bf16.mxu0 %v2747
        %2801 = vmatpush2.bf16.msra.mxu0 %v2746
        %2802 = vmatprep.subr.bf16.mxu0 %v2745
        %2803 = vmatpush2.bf16.msra.mxu0 %v2744
        %2804 = vmatprep.subr.bf16.mxu0 %v2743
        %2805 = vmatpush2.bf16.msra.mxu0 %v2742
        %2806 = vmatprep.subr.bf16.mxu0 %v2741
        %2807 = vmatpush2.bf16.msra.mxu0 %v2740
        %2808 = vmatprep.subr.bf16.mxu0 %v2739
        %2809 = vmatpush2.bf16.msra.mxu0 %v2738
        %2810 = vmatprep.subr.bf16.mxu0 %v2737
        %2811 = vmatpush2.bf16.msra.mxu0 %v2736
        %2812 = vmatprep.subr.bf16.mxu0 %v2735
        %2813 = vmatpush2.bf16.msra.mxu0 %v2734
        %2814 = vmatprep.mubr.bf16.mxu0 %v2581
        %2815 = vmatmul.mubr.bf16.gmra.mxu0 %v2580
        %v2816 = vpop.f32.mrf.mxu0
        %v2817 = vadd.f32 %v2617, %v2816
        %v2818 = vpop.f32.mrf.mxu0
        %v2819 = vadd.f32 %v2621, %v2818
        %v2820 = vpop.f32.mrf.mxu0
        %v2821 = vpop.f32.mrf.mxu0
        %2822 = vdwg.mxu0
        %v2823 = vtanh.pop %v2817
        %v2824 = vtanh.pop %v2819
        %v2825 = vpack.c.bf16 %v2823, %v2823
        %v2826 = vpack.c.bf16 %v2824, %v2824
        %v2827 = vld [vmem:[#allocation7 + $0x38] sm:$0xf]
        %v2828 = vld [vmem:[#allocation7 + $0x84] sm:$0xf]
        %v2829 = vld [vmem:[#allocation7 + $0xd0] sm:$0xf]
        %v2830 = vld [vmem:[#allocation7 + $0x11c] sm:$0xf]
        %v2831 = vld [vmem:[#allocation7 + $0x168] sm:$0xf]
        %v2832 = vld [vmem:[#allocation7 + $0x1b4] sm:$0xf]
        %v2833 = vld [vmem:[#allocation7 + $0x200] sm:$0xf]
        %v2834 = vld [vmem:[#allocation7 + $0x24c] sm:$0xf]
        %v2835 = vld [vmem:[#allocation7 + $0x298] sm:$0xf]
        %v2836 = vld [vmem:[#allocation7 + $0x2e4] sm:$0xf]
        %v2837 = vld [vmem:[#allocation7 + $0x330] sm:$0xf]
        %v2838 = vld [vmem:[#allocation7 + $0x37c] sm:$0xf]
        %v2839 = vld [vmem:[#allocation7 + $0x3c8] sm:$0xf]
        %v2840 = vld [vmem:[#allocation7 + $0x414] sm:$0xf]
        %v2841 = vld [vmem:[#allocation7 + $0x460] sm:$0xf]
        %v2842 = vld [vmem:[#allocation7 + $0x4ac] sm:$0xf]
        %v2843 = vld [vmem:[#allocation7 + $0x4f8] sm:$0xf]
        %v2844 = vld [vmem:[#allocation7 + $0x544] sm:$0xf]
        %v2845 = vld [vmem:[#allocation7 + $0x590] sm:$0xf]
        %v2846 = vld [vmem:[#allocation7 + $0x5dc] sm:$0xf]
        %v2847 = vld [vmem:[#allocation7 + $0x628] sm:$0xf]
        %v2848 = vld [vmem:[#allocation7 + $0x674] sm:$0xf]
        %v2849 = vld [vmem:[#allocation7 + $0x6c0] sm:$0xf]
        %v2850 = vld [vmem:[#allocation7 + $0x70c] sm:$0xf]
        %v2851 = vld [vmem:[#allocation7 + $0x758] sm:$0xf]
        %v2852 = vld [vmem:[#allocation7 + $0x7a4] sm:$0xf]
        %v2853 = vld [vmem:[#allocation7 + $0x7f0] sm:$0xf]
        %v2854 = vld [vmem:[#allocation7 + $0x83c] sm:$0xf]
        %v2855 = vld [vmem:[#allocation7 + $0x888] sm:$0xf]
        %v2856 = vld [vmem:[#allocation7 + $0x8d4] sm:$0xf]
        %v2857 = vld [vmem:[#allocation7 + $0x920] sm:$0xf]
        %v2858 = vld [vmem:[#allocation7 + $0x96c] sm:$0xf]
        %v2859 = vlaneseq
        %v2860 = vshrl.u32 %v2859, 7
        %v2861 = vsub.s32 2, %v2860
        %v2862 = vrot.slane %v283, %v2861
        %v2895 = vunpack.c.l.b16 %v2827
        %v2896 = vunpack.c.l.b16 %v2828
        %v2897 = vunpack.c.l.b16 %v2829
        %v2898 = vunpack.c.l.b16 %v2830
        %v2899 = vunpack.c.l.b16 %v2831
        %v2900 = vunpack.c.l.b16 %v2832
        %v2901 = vunpack.c.l.b16 %v2833
        %v2902 = vunpack.c.l.b16 %v2834
        %v2903 = vunpack.c.l.b16 %v2835
        %v2904 = vunpack.c.l.b16 %v2836
        %v2905 = vunpack.c.l.b16 %v2837
        %v2906 = vunpack.c.l.b16 %v2838
        %v2907 = vunpack.c.l.b16 %v2839
        %v2908 = vunpack.c.l.b16 %v2840
        %v2909 = vunpack.c.l.b16 %v2841
        %v2910 = vunpack.c.l.b16 %v2842
        %v2911 = vunpack.c.l.b16 %v2843
        %v2912 = vunpack.c.l.b16 %v2844
        %v2913 = vunpack.c.l.b16 %v2845
        %v2914 = vunpack.c.l.b16 %v2846
        %v2915 = vunpack.c.l.b16 %v2847
        %v2916 = vunpack.c.l.b16 %v2848
        %v2917 = vunpack.c.l.b16 %v2849
        %v2918 = vunpack.c.l.b16 %v2850
        %v2919 = vunpack.c.l.b16 %v2851
        %v2920 = vunpack.c.l.b16 %v2852
        %v2921 = vunpack.c.l.b16 %v2853
        %v2922 = vunpack.c.l.b16 %v2854
        %v2923 = vunpack.c.l.b16 %v2855
        %v2924 = vunpack.c.l.b16 %v2856
        %v2925 = vunpack.c.l.b16 %v2857
        %v2926 = vunpack.c.l.b16 %v2858
        %v2927 = vpack.c.b16 %v2896, %v2895
        %v2928 = vpack.c.b16 %v2898, %v2897
        %v2929 = vpack.c.b16 %v2900, %v2899
        %v2930 = vpack.c.b16 %v2902, %v2901
        %v2931 = vpack.c.b16 %v2904, %v2903
        %v2932 = vpack.c.b16 %v2906, %v2905
        %v2933 = vpack.c.b16 %v2908, %v2907
        %v2934 = vpack.c.b16 %v2910, %v2909
        %v2935 = vpack.c.b16 %v2912, %v2911
        %v2936 = vpack.c.b16 %v2914, %v2913
        %v2937 = vpack.c.b16 %v2916, %v2915
        %v2938 = vpack.c.b16 %v2918, %v2917
        %v2939 = vpack.c.b16 %v2920, %v2919
        %v2940 = vpack.c.b16 %v2922, %v2921
        %v2941 = vpack.c.b16 %v2924, %v2923
        %v2942 = vpack.c.b16 %v2926, %v2925
        %2959 = vmatprep.subr.bf16.mxu0 0
        %2960 = vmatpush1.bf16.msra.mxu0 %v2934
        %2961 = vmatprep.subr.bf16.mxu0 0
        %2962 = vmatpush1.bf16.msra.mxu0 %v2933
        %2963 = vmatprep.subr.bf16.mxu0 0
        %2964 = vmatpush1.bf16.msra.mxu0 %v2932
        %2965 = vmatprep.subr.bf16.mxu0 0
        %2966 = vmatpush1.bf16.msra.mxu0 %v2931
        %2967 = vmatprep.subr.bf16.mxu0 0
        %2968 = vmatpush1.bf16.msra.mxu0 %v2930
        %2969 = vmatprep.subr.bf16.mxu0 0
        %2970 = vmatpush1.bf16.msra.mxu0 %v2929
        %2971 = vmatprep.subr.bf16.mxu0 0
        %2972 = vmatpush1.bf16.msra.mxu0 %v2928
        %2973 = vmatprep.subr.bf16.mxu0 0
        %2974 = vmatpush1.bf16.msra.mxu0 %v2927
        %2975 = vmatprep.subr.bf16.mxu0 0
        %2976 = vmatpush2.bf16.msra.mxu0 %v2942
        %2977 = vmatprep.subr.bf16.mxu0 0
        %2978 = vmatpush2.bf16.msra.mxu0 %v2941
        %2979 = vmatprep.subr.bf16.mxu0 0
        %2980 = vmatpush2.bf16.msra.mxu0 %v2940
        %2981 = vmatprep.subr.bf16.mxu0 0
        %2982 = vmatpush2.bf16.msra.mxu0 %v2939
        %2983 = vmatprep.subr.bf16.mxu0 0
        %2984 = vmatpush2.bf16.msra.mxu0 %v2938
        %2985 = vmatprep.subr.bf16.mxu0 0
        %2986 = vmatpush2.bf16.msra.mxu0 %v2937
        %2987 = vmatprep.subr.bf16.mxu0 0
        %2988 = vmatpush2.bf16.msra.mxu0 %v2936
        %2989 = vmatprep.subr.bf16.mxu0 0
        %2990 = vmatpush2.bf16.msra.mxu0 %v2935
        %2991 = vmatprep.mubr.bf16.mxu0 %v2826
        %2992 = vmatmul.mubr.bf16.gmra.mxu0 %v2825
        %v2993 = vpop.f32.mrf.mxu0
        %v2994 = vadd.f32 %v2862, %v2993
        %v2995 = vpop.f32.mrf.mxu0
        %v2996 = vpop.f32.mrf.mxu0
        %v2997 = vpop.f32.mrf.mxu0
        %2998 = vdwg.mxu0
        %2999 = vst [vmem:[%s274] sm:$0xff] %v2994
        %s3000 = sand.u32 %s127, 1
        %s3001 = scalar_lea.sflag [#allocation4], %s3000
        %s3002 = sand.u32 %s127, 1
        %s3003 = smul.addr %s3002, 8
        %s3004 = scalar_lea.vmem [#allocation10], %s3003
        // Predicated region
        $region53: #{tpu_custom_call.1} parent=35 // pred_check
          %p3005 = pneg %p137
        $region54: #{tpu_custom_call.1} parent=35 // pred_check_branch
          %3007 = sbr.rel (%p3005) target = $region56
        $region55: #{tpu_custom_call.1} parent=35 // pred_region
          %s3009 = ssub.s32 128, 128
          %3010 = vsyncadd %s3001, %s3009
          %s3011 = smul.addr %s25, 128
          %s3012 = scalar_lea.hbm %s4, %s3011
          %s3014 = sshll.u32 %s3004, 4
          %s3015 = int_to_ptr.vmem [resolvable:$true] %s3014
          %3017 = dma.vmem_to_hbm [thread:$0]  %s3015, 128, %s3012, %s3001
        $region56: #{tpu_custom_call.1} parent=35 // pred_fallthru
          _
      $region36: #{tpu_custom_call.1} parent=5 // pred_fallthru
        _
      %p3018 = scmp.le.s32.totalorder 2, %s20
      // Predicated region
      $region57: #{tpu_custom_call.1} parent=5 // pred_check
        %p3019 = pneg %p3018
      $region58: #{tpu_custom_call.1} parent=5 // pred_check_branch
        %3021 = sbr.rel (%p3019) target = $region60
      $region59: #{tpu_custom_call.1} parent=5 // pred_region
        %s3022 = ssub.s32 %s20, 2
        // Predicated region
        $region61: #{tpu_custom_call.1} parent=59 // pred_check
          %p3023 = pneg %p143
        $region62: #{tpu_custom_call.1} parent=59 // pred_check_branch
          %3025 = sbr.rel (%p3023) target = $region64
        $region63: #{tpu_custom_call.1} parent=59 // pred_region
          %s3026 = sand.u32 %s128, 1
          %s3027 = scalar_lea.sflag [#allocation4], %s3026
          %s3028 = sand.u32 %s128, 1
          %s3029 = smul.addr %s3028, 8
          %s3030 = scalar_lea.vmem [#allocation10], %s3029
          %3031 = dma.done %s3027, 128
        $region64: #{tpu_custom_call.1} parent=59 // pred_fallthru
          _
      $region60: #{tpu_custom_call.1} parent=5 // pred_fallthru
        _
    $region6: #{tpu_custom_call.1} parent=1 // loop_footer
      %s24 = sadd.s32 1, %s20
    $region7: #{tpu_custom_call.1} parent=1 // loop_footer_branch
      %19 = sbr.rel target = $region3
    $region8: #{tpu_custom_call.1} parent=1 // loop_exit
      _
    %3032 = vsyncpa [#allocation3], 1
    %s3033 = scalar_lea.sflag [#allocation3], 1
    %3034 = vsyncpa %s3033, 1
    %3035 = vsyncpa [#allocation6], 1
    %s3036 = scalar_lea.sflag [#allocation6], 1
    %3037 = vsyncpa %s3036, 1
    %3038 = vsyncpa [#allocation9], 1
    %3039 = vsyncpa [#allocation4], 1
    %s3040 = scalar_lea.sflag [#allocation4], 1
    %3041 = vsyncpa %s3040, 1

</llo_original>
